<compile_context>
chip_gen: v5e
topology: v5e:2x2
jax: 0.10.0
libtpu: 0.0.40
codegen_flags: <defaults>
</compile_context>

<pallas_src>
import functools
import math

import jax
import jax.numpy as jnp
from jax import lax
from jax.experimental import pallas as pl
from jax.experimental.pallas import tpu as pltpu


# ----------------------------------------------------------------------------
# helpers
# ----------------------------------------------------------------------------

def _layer_norm(y, g, b, eps=1e-5):
  """LayerNorm over the last dim, f32 math (matches nn.LayerNorm eps=1e-5)."""
  mu = jnp.mean(y, axis=-1, keepdims=True)
  var = jnp.mean((y - mu) ** 2, axis=-1, keepdims=True)
  return (y - mu) * lax.rsqrt(var + eps) * g + b


def _bf16_dot(a_f32, w_bf16):
  """bf16 MXU matmul with f32 accumulation."""
  return jnp.dot(a_f32.astype(jnp.bfloat16), w_bf16,
                 preferred_element_type=jnp.float32)


# ----------------------------------------------------------------------------
# fused kernel: one batch element per grid step
# ----------------------------------------------------------------------------

def _module_transformer_kernel(
    q_ref, k_ref, v_ref,                                   # (1, L, E) each
    wq_ref, bq_ref, wk_ref, bk_ref, wv_ref, bv_ref,        # in-proj
    wo_ref, bo_ref,                                        # out-proj
    g1_ref, be1_ref,                                       # LayerNorm1
    wm1_ref, bm1_ref, wm2_ref, bm2_ref,                    # MLP
    g2_ref, be2_ref,                                       # LayerNorm2
    o_ref, attn_ref):                                      # (1,L,E), (1,L,L)
  E = q_ref.shape[-1]
  scale = 1.0 / math.sqrt(E)                   # single head -> head_dim == E

  xq = q_ref[0]                                # (L, E) f32
  xk = k_ref[0]
  xv = v_ref[0]

  # --- in-projections (2-D bf16 matmuls, f32 accumulate) ---
  qp = _bf16_dot(xq, wq_ref[...]) + bq_ref[...]            # (L, E)
  kp = _bf16_dot(xk, wk_ref[...]) + bk_ref[...]
  vp = _bf16_dot(xv, wv_ref[...]) + bv_ref[...]

  # --- scaled dot-product attention (contract last dims; no transpose) ---
  s = lax.dot_general(qp.astype(jnp.bfloat16), kp.astype(jnp.bfloat16),
                      (((1,), (1,)), ((), ())),
                      preferred_element_type=jnp.float32) * scale   # (L, L)
  s = s - jnp.max(s, axis=-1, keepdims=True)
  p = jnp.exp(s)
  inv = pl.reciprocal(jnp.sum(p, axis=-1, keepdims=True), approx=True)
  attn = p * inv                                           # (L, L) f32
  attn_ref[0] = attn                                       # returned weights

  ctx = jnp.dot(attn.astype(jnp.bfloat16), vp.astype(jnp.bfloat16),
                preferred_element_type=jnp.float32)        # (L, E)
  a_out = _bf16_dot(ctx, wo_ref[...]) + bo_ref[...]        # out-proj

  # dropout1: identity (eval mode)
  y = _layer_norm(a_out, g1_ref[...], be1_ref[...])        # LayerNorm1

  # --- MLP: Linear(E,H) ReLU [Dropout] Linear(H,E) ---
  m = jnp.maximum(_bf16_dot(y, wm1_ref[...]) + bm1_ref[...], 0.0)
  m = _bf16_dot(m, wm2_ref[...]) + bm2_ref[...]

  # dropout2: identity (eval mode); residual + LayerNorm2
  o_ref[0] = _layer_norm(y + m, g2_ref[...], be2_ref[...])


# ----------------------------------------------------------------------------
# wrapper
# ----------------------------------------------------------------------------

def module_transformer_call(q, k, v, p):
  """q, k, v: (L, B, E) f32 -> (x_attend (L, B, E), attn_matrix (B, L, L))."""
  L, B, E = q.shape
  Hd = p['wm1'].shape[1]

  # batch-major layout so the grid axis is the outermost array dim and the
  # last two block dims equal the full array dims (lane/sublane friendly).
  qb = jnp.transpose(q, (1, 0, 2))
  kb = jnp.transpose(k, (1, 0, 2))
  vb = jnp.transpose(v, (1, 0, 2))

  act_spec = pl.BlockSpec((1, L, E), lambda b: (b, 0, 0))

  def w_spec(shape):
    nd = len(shape)
    return pl.BlockSpec(shape, lambda b, _nd=nd: (0,) * _nd)

  weights = (p['wq'], p['bq'], p['wk'], p['bk'], p['wv'], p['bv'],
             p['wo'], p['bo'], p['ln1_g'], p['ln1_b'],
             p['wm1'], p['bm1'], p['wm2'], p['bm2'],
             p['ln2_g'], p['ln2_b'])

  flops = B * (2 * L * E * E * 4        # q/k/v/out projections
               + 2 * L * L * E * 2      # scores + context
               + 2 * L * E * Hd * 2)    # MLP
  bytes_accessed = int((3 * B * L * E + B * L * E + B * L * L) * 4
                       + sum(int(w.size) * w.dtype.itemsize for w in weights))
  cost = pl.CostEstimate(flops=flops,
                         transcendentals=B * (L * L + 2 * L),
                         bytes_accessed=bytes_accessed)

  xb, attn = pl.pallas_call(
      _module_transformer_kernel,
      out_shape=(jax.ShapeDtypeStruct((B, L, E), jnp.float32),
                 jax.ShapeDtypeStruct((B, L, L), jnp.float32)),
      grid=(B,),
      in_specs=[act_spec, act_spec, act_spec]
               + [w_spec(w.shape) for w in weights],
      out_specs=(pl.BlockSpec((1, L, E), lambda b: (b, 0, 0)),
                 pl.BlockSpec((1, L, L), lambda b: (b, 0, 0))),
      compiler_params=pltpu.CompilerParams(
          dimension_semantics=("parallel",)),
      cost_estimate=cost,
  )(qb, kb, vb, *weights)

  return jnp.transpose(xb, (1, 0, 2)), attn


# ----------------------------------------------------------------------------
# deterministic synthetic parameters
# ----------------------------------------------------------------------------

def init_params(key, n_region, hidden_dim):
  keys = iter(jax.random.split(key, 32))

  def nrm(shape, scale=0.1, dtype=jnp.float32):
    return (scale * jax.random.normal(next(keys), shape, jnp.float32)
            ).astype(dtype)

  p = {}
  # MultiheadAttention in/out projections (weights stored bf16 for the MXU)
  for name in ('wq', 'wk', 'wv', 'wo'):
    p[name] = nrm((n_region, n_region), dtype=jnp.bfloat16)
  for name in ('bq', 'bk', 'bv', 'bo'):
    p[name] = nrm((1, n_region))
  # LayerNorms (f32)
  p['ln1_g'] = 1.0 + nrm((1, n_region), 0.01)
  p['ln1_b'] = nrm((1, n_region), 0.01)
  p['ln2_g'] = 1.0 + nrm((1, n_region), 0.01)
  p['ln2_b'] = nrm((1, n_region), 0.01)
  # MLP: Linear(n_region, hidden_dim) ReLU Dropout Linear(hidden_dim, n_region)
  p['wm1'] = nrm((n_region, hidden_dim), dtype=jnp.bfloat16)
  p['bm1'] = nrm((1, hidden_dim))
  p['wm2'] = nrm((hidden_dim, n_region), dtype=jnp.bfloat16)
  p['bm2'] = nrm((1, n_region))
  return p


# ----------------------------------------------------------------------------

if __name__ == "__main__":
  L, B, E, HID = 8, 2, 32, 64          # seq, batch, n_region (embed), mlp hidden
  key = jax.random.PRNGKey(0)
  kq, kk, kv, kparam = jax.random.split(key, 4)
  q = jax.random.normal(kq, (L, B, E), jnp.float32)
  k = jax.random.normal(kk, (L, B, E), jnp.float32)
  v = jax.random.normal(kv, (L, B, E), jnp.float32)
  params = init_params(kparam, E, HID)

  fwd = jax.jit(functools.partial(module_transformer_call, p=params))
  x_attend, attn_matrix = fwd(q, k, v)
  jax.block_until_ready((x_attend, attn_matrix))

  assert x_attend.shape == (L, B, E), x_attend.shape
  assert attn_matrix.shape == (B, L, L), attn_matrix.shape
  assert jnp.all(jnp.isfinite(x_attend)) and jnp.all(jnp.isfinite(attn_matrix))
  # softmax rows should sum to ~1 (approx reciprocal => loose tolerance)
  assert jnp.allclose(jnp.sum(attn_matrix, axis=-1), 1.0, atol=1e-2)
  print("KERNEL_OK")
</pallas_src>

<mosaic_0001>
module attributes {stable_mosaic.version = 11 : i64} {
  func.func @_module_transformer_kernel(%arg0: i32, %arg1: memref<1x8x32xf32, #tpu.memory_space<vmem>>, %arg2: memref<1x8x32xf32, #tpu.memory_space<vmem>>, %arg3: memref<1x8x32xf32, #tpu.memory_space<vmem>>, %arg4: memref<32x32xbf16, #tpu.memory_space<vmem>>, %arg5: memref<1x32xf32, #tpu.memory_space<vmem>>, %arg6: memref<32x32xbf16, #tpu.memory_space<vmem>>, %arg7: memref<1x32xf32, #tpu.memory_space<vmem>>, %arg8: memref<32x32xbf16, #tpu.memory_space<vmem>>, %arg9: memref<1x32xf32, #tpu.memory_space<vmem>>, %arg10: memref<32x32xbf16, #tpu.memory_space<vmem>>, %arg11: memref<1x32xf32, #tpu.memory_space<vmem>>, %arg12: memref<1x32xf32, #tpu.memory_space<vmem>>, %arg13: memref<1x32xf32, #tpu.memory_space<vmem>>, %arg14: memref<32x64xbf16, #tpu.memory_space<vmem>>, %arg15: memref<1x64xf32, #tpu.memory_space<vmem>>, %arg16: memref<64x32xbf16, #tpu.memory_space<vmem>>, %arg17: memref<1x32xf32, #tpu.memory_space<vmem>>, %arg18: memref<1x32xf32, #tpu.memory_space<vmem>>, %arg19: memref<1x32xf32, #tpu.memory_space<vmem>>, %arg20: memref<1x8x32xf32, #tpu.memory_space<vmem>>, %arg21: memref<1x8x8xf32, #tpu.memory_space<vmem>>) attributes {dimension_semantics = [#tpu.dimension_semantics<parallel>], iteration_bounds = array<i64: 2>, scalar_prefetch = 0 : i64, scratch_operands = 0 : i64, tpu.core_type = #tpu.core_type<tc>, window_params = [{transform_indices = @transform_0, window_bounds = array<i64: 1, 8, 32>}, {transform_indices = @transform_1, window_bounds = array<i64: 1, 8, 32>}, {transform_indices = @transform_2, window_bounds = array<i64: 1, 8, 32>}, {pipeline_mode = #tpu.pipeline_mode<synchronous>, transform_indices = @transform_3, window_bounds = array<i64: 32, 32>}, {pipeline_mode = #tpu.pipeline_mode<synchronous>, transform_indices = @transform_4, window_bounds = array<i64: 1, 32>}, {pipeline_mode = #tpu.pipeline_mode<synchronous>, transform_indices = @transform_5, window_bounds = array<i64: 32, 32>}, {pipeline_mode = #tpu.pipeline_mode<synchronous>, transform_indices = @transform_6, window_bounds = array<i64: 1, 32>}, {pipeline_mode = #tpu.pipeline_mode<synchronous>, transform_indices = @transform_7, window_bounds = array<i64: 32, 32>}, {pipeline_mode = #tpu.pipeline_mode<synchronous>, transform_indices = @transform_8, window_bounds = array<i64: 1, 32>}, {pipeline_mode = #tpu.pipeline_mode<synchronous>, transform_indices = @transform_9, window_bounds = array<i64: 32, 32>}, {pipeline_mode = #tpu.pipeline_mode<synchronous>, transform_indices = @transform_10, window_bounds = array<i64: 1, 32>}, {pipeline_mode = #tpu.pipeline_mode<synchronous>, transform_indices = @transform_11, window_bounds = array<i64: 1, 32>}, {pipeline_mode = #tpu.pipeline_mode<synchronous>, transform_indices = @transform_12, window_bounds = array<i64: 1, 32>}, {pipeline_mode = #tpu.pipeline_mode<synchronous>, transform_indices = @transform_13, window_bounds = array<i64: 32, 64>}, {pipeline_mode = #tpu.pipeline_mode<synchronous>, transform_indices = @transform_14, window_bounds = array<i64: 1, 64>}, {pipeline_mode = #tpu.pipeline_mode<synchronous>, transform_indices = @transform_15, window_bounds = array<i64: 64, 32>}, {pipeline_mode = #tpu.pipeline_mode<synchronous>, transform_indices = @transform_16, window_bounds = array<i64: 1, 32>}, {pipeline_mode = #tpu.pipeline_mode<synchronous>, transform_indices = @transform_17, window_bounds = array<i64: 1, 32>}, {pipeline_mode = #tpu.pipeline_mode<synchronous>, transform_indices = @transform_18, window_bounds = array<i64: 1, 32>}, {transform_indices = @transform_19, window_bounds = array<i64: 1, 8, 32>}, {transform_indices = @transform_20, window_bounds = array<i64: 1, 8, 8>}]} {
    %c0 = arith.constant 0 : index
    %c0_0 = arith.constant 0 : index
    %c0_1 = arith.constant 0 : index
    %0 = vector.load %arg1[%c0, %c0_0, %c0_1] : memref<1x8x32xf32, #tpu.memory_space<vmem>>, vector<1x8x32xf32>
    %1 = vector.shape_cast %0 : vector<1x8x32xf32> to vector<8x32xf32>
    %c0_2 = arith.constant 0 : index
    %c0_3 = arith.constant 0 : index
    %c0_4 = arith.constant 0 : index
    %2 = vector.load %arg2[%c0_2, %c0_3, %c0_4] : memref<1x8x32xf32, #tpu.memory_space<vmem>>, vector<1x8x32xf32>
    %3 = vector.shape_cast %2 : vector<1x8x32xf32> to vector<8x32xf32>
    %c0_5 = arith.constant 0 : index
    %c0_6 = arith.constant 0 : index
    %c0_7 = arith.constant 0 : index
    %4 = vector.load %arg3[%c0_5, %c0_6, %c0_7] : memref<1x8x32xf32, #tpu.memory_space<vmem>>, vector<1x8x32xf32>
    %5 = vector.shape_cast %4 : vector<1x8x32xf32> to vector<8x32xf32>
    %c0_8 = arith.constant 0 : index
    %c0_9 = arith.constant 0 : index
    %6 = vector.load %arg4[%c0_8, %c0_9] : memref<32x32xbf16, #tpu.memory_space<vmem>>, vector<32x32xbf16>
    %7 = arith.truncf %1 : vector<8x32xf32> to vector<8x32xbf16>
    %cst = arith.constant dense<0.000000e+00> : vector<8x32xf32>
    %8 = tpu.matmul %7, %6, %cst {dimension_numbers = #tpu.dot_dimension_numbers<[1], [0], [0], [1], [0, 0, 1, 1], [], []>} : vector<8x32xbf16>, vector<32x32xbf16>, vector<8x32xf32> -> vector<8x32xf32>
    %c0_10 = arith.constant 0 : index
    %c0_11 = arith.constant 0 : index
    %9 = vector.load %arg5[%c0_10, %c0_11] : memref<1x32xf32, #tpu.memory_space<vmem>>, vector<1x32xf32>
    %10 = vector.broadcast %9 : vector<1x32xf32> to vector<8x32xf32>
    %11 = arith.addf %8, %10 : vector<8x32xf32>
    %c0_12 = arith.constant 0 : index
    %c0_13 = arith.constant 0 : index
    %12 = vector.load %arg6[%c0_12, %c0_13] : memref<32x32xbf16, #tpu.memory_space<vmem>>, vector<32x32xbf16>
    %13 = arith.truncf %3 : vector<8x32xf32> to vector<8x32xbf16>
    %cst_14 = arith.constant dense<0.000000e+00> : vector<8x32xf32>
    %14 = tpu.matmul %13, %12, %cst_14 {dimension_numbers = #tpu.dot_dimension_numbers<[1], [0], [0], [1], [0, 0, 1, 1], [], []>} : vector<8x32xbf16>, vector<32x32xbf16>, vector<8x32xf32> -> vector<8x32xf32>
    %c0_15 = arith.constant 0 : index
    %c0_16 = arith.constant 0 : index
    %15 = vector.load %arg7[%c0_15, %c0_16] : memref<1x32xf32, #tpu.memory_space<vmem>>, vector<1x32xf32>
    %16 = vector.broadcast %15 : vector<1x32xf32> to vector<8x32xf32>
    %17 = arith.addf %14, %16 : vector<8x32xf32>
    %c0_17 = arith.constant 0 : index
    %c0_18 = arith.constant 0 : index
    %18 = vector.load %arg8[%c0_17, %c0_18] : memref<32x32xbf16, #tpu.memory_space<vmem>>, vector<32x32xbf16>
    %19 = arith.truncf %5 : vector<8x32xf32> to vector<8x32xbf16>
    %cst_19 = arith.constant dense<0.000000e+00> : vector<8x32xf32>
    %20 = tpu.matmul %19, %18, %cst_19 {dimension_numbers = #tpu.dot_dimension_numbers<[1], [0], [0], [1], [0, 0, 1, 1], [], []>} : vector<8x32xbf16>, vector<32x32xbf16>, vector<8x32xf32> -> vector<8x32xf32>
    %c0_20 = arith.constant 0 : index
    %c0_21 = arith.constant 0 : index
    %21 = vector.load %arg9[%c0_20, %c0_21] : memref<1x32xf32, #tpu.memory_space<vmem>>, vector<1x32xf32>
    %22 = vector.broadcast %21 : vector<1x32xf32> to vector<8x32xf32>
    %23 = arith.addf %20, %22 : vector<8x32xf32>
    %24 = arith.truncf %11 : vector<8x32xf32> to vector<8x32xbf16>
    %25 = arith.truncf %17 : vector<8x32xf32> to vector<8x32xbf16>
    %cst_22 = arith.constant dense<0.000000e+00> : vector<8x8xf32>
    %26 = tpu.matmul %24, %25, %cst_22 {dimension_numbers = #tpu.dot_dimension_numbers<[1], [1], [0], [0], [0, 0, 1, 0], [], []>} : vector<8x32xbf16>, vector<8x32xbf16>, vector<8x8xf32> -> vector<8x8xf32>
    %cst_23 = arith.constant 0.176776692 : f32
    %27 = vector.broadcast %cst_23 : f32 to vector<8x8xf32>
    %28 = arith.mulf %26, %27 : vector<8x8xf32>
    %cst_24 = arith.constant dense<0xFF800000> : vector<8xf32>
    %29 = vector.multi_reduction <maximumf>, %28, %cst_24 [1] : vector<8x8xf32> to vector<8xf32>
    %30 = vector.shape_cast %29 : vector<8xf32> to vector<8x1xf32>
    %31 = vector.broadcast %30 : vector<8x1xf32> to vector<8x8xf32>
    %32 = arith.subf %28, %31 : vector<8x8xf32>
    %33 = math.exp %32 : vector<8x8xf32>
    %cst_25 = arith.constant dense<0.000000e+00> : vector<8xf32>
    %34 = vector.multi_reduction <add>, %33, %cst_25 [1] : vector<8x8xf32> to vector<8xf32>
    %35 = vector.shape_cast %34 : vector<8xf32> to vector<8x1xf32>
    %36 = tpu.reciprocal %35 {approx = true} : vector<8x1xf32> -> vector<8x1xf32>
    %37 = vector.broadcast %36 : vector<8x1xf32> to vector<8x8xf32>
    %38 = arith.mulf %33, %37 : vector<8x8xf32>
    %c0_26 = arith.constant 0 : index
    %c0_27 = arith.constant 0 : index
    %c0_28 = arith.constant 0 : index
    %39 = vector.load %arg21[%c0_26, %c0_27, %c0_28] : memref<1x8x8xf32, #tpu.memory_space<vmem>>, vector<1x8x8xf32>
    %40 = vector.shape_cast %39 : vector<1x8x8xf32> to vector<8x8xf32>
    %41 = vector.shape_cast %38 : vector<8x8xf32> to vector<1x8x8xf32>
    tpu.vector_store %arg21[%c0_26, %c0_27, %c0_28], %41 {strides = array<i32>} : memref<1x8x8xf32, #tpu.memory_space<vmem>>, vector<1x8x8xf32>,
    %42 = arith.truncf %38 : vector<8x8xf32> to vector<8x8xbf16>
    %43 = arith.truncf %23 : vector<8x32xf32> to vector<8x32xbf16>
    %cst_29 = arith.constant dense<0.000000e+00> : vector<8x32xf32>
    %44 = tpu.matmul %42, %43, %cst_29 {dimension_numbers = #tpu.dot_dimension_numbers<[1], [0], [0], [1], [0, 0, 1, 1], [], []>} : vector<8x8xbf16>, vector<8x32xbf16>, vector<8x32xf32> -> vector<8x32xf32>
    %c0_30 = arith.constant 0 : index
    %c0_31 = arith.constant 0 : index
    %45 = vector.load %arg10[%c0_30, %c0_31] : memref<32x32xbf16, #tpu.memory_space<vmem>>, vector<32x32xbf16>
    %46 = arith.truncf %44 : vector<8x32xf32> to vector<8x32xbf16>
    %cst_32 = arith.constant dense<0.000000e+00> : vector<8x32xf32>
    %47 = tpu.matmul %46, %45, %cst_32 {dimension_numbers = #tpu.dot_dimension_numbers<[1], [0], [0], [1], [0, 0, 1, 1], [], []>} : vector<8x32xbf16>, vector<32x32xbf16>, vector<8x32xf32> -> vector<8x32xf32>
    %c0_33 = arith.constant 0 : index
    %c0_34 = arith.constant 0 : index
    %48 = vector.load %arg11[%c0_33, %c0_34] : memref<1x32xf32, #tpu.memory_space<vmem>>, vector<1x32xf32>
    %49 = vector.broadcast %48 : vector<1x32xf32> to vector<8x32xf32>
    %50 = arith.addf %47, %49 : vector<8x32xf32>
    %c0_35 = arith.constant 0 : index
    %c0_36 = arith.constant 0 : index
    %51 = vector.load %arg12[%c0_35, %c0_36] : memref<1x32xf32, #tpu.memory_space<vmem>>, vector<1x32xf32>
    %c0_37 = arith.constant 0 : index
    %c0_38 = arith.constant 0 : index
    %52 = vector.load %arg13[%c0_37, %c0_38] : memref<1x32xf32, #tpu.memory_space<vmem>>, vector<1x32xf32>
    %cst_39 = arith.constant dense<0.000000e+00> : vector<8xf32>
    %53 = vector.multi_reduction <add>, %50, %cst_39 [1] : vector<8x32xf32> to vector<8xf32>
    %54 = vector.shape_cast %53 : vector<8xf32> to vector<8x1xf32>
    %cst_40 = arith.constant 3.200000e+01 : f32
    %55 = vector.broadcast %cst_40 : f32 to vector<8x1xf32>
    %56 = arith.divf %54, %55 : vector<8x1xf32>
    %57 = vector.broadcast %56 : vector<8x1xf32> to vector<8x32xf32>
    %58 = arith.subf %50, %57 : vector<8x32xf32>
    %59 = arith.mulf %58, %58 : vector<8x32xf32>
    %cst_41 = arith.constant dense<0.000000e+00> : vector<8xf32>
    %60 = vector.multi_reduction <add>, %59, %cst_41 [1] : vector<8x32xf32> to vector<8xf32>
    %61 = vector.shape_cast %60 : vector<8xf32> to vector<8x1xf32>
    %cst_42 = arith.constant 3.200000e+01 : f32
    %62 = vector.broadcast %cst_42 : f32 to vector<8x1xf32>
    %63 = arith.divf %61, %62 : vector<8x1xf32>
    %64 = vector.broadcast %56 : vector<8x1xf32> to vector<8x32xf32>
    %65 = arith.subf %50, %64 : vector<8x32xf32>
    %cst_43 = arith.constant 9.99999974E-6 : f32
    %66 = vector.broadcast %cst_43 : f32 to vector<8x1xf32>
    %67 = arith.addf %63, %66 : vector<8x1xf32>
    %68 = math.rsqrt %67 : vector<8x1xf32>
    %69 = vector.broadcast %68 : vector<8x1xf32> to vector<8x32xf32>
    %70 = arith.mulf %65, %69 : vector<8x32xf32>
    %71 = vector.broadcast %51 : vector<1x32xf32> to vector<8x32xf32>
    %72 = arith.mulf %70, %71 : vector<8x32xf32>
    %73 = vector.broadcast %52 : vector<1x32xf32> to vector<8x32xf32>
    %74 = arith.addf %72, %73 : vector<8x32xf32>
    %c0_44 = arith.constant 0 : index
    %c0_45 = arith.constant 0 : index
    %75 = vector.load %arg14[%c0_44, %c0_45] : memref<32x64xbf16, #tpu.memory_space<vmem>>, vector<32x64xbf16>
    %76 = arith.truncf %74 : vector<8x32xf32> to vector<8x32xbf16>
    %cst_46 = arith.constant dense<0.000000e+00> : vector<8x64xf32>
    %77 = tpu.matmul %76, %75, %cst_46 {dimension_numbers = #tpu.dot_dimension_numbers<[1], [0], [0], [1], [0, 0, 1, 1], [], []>} : vector<8x32xbf16>, vector<32x64xbf16>, vector<8x64xf32> -> vector<8x64xf32>
    %c0_47 = arith.constant 0 : index
    %c0_48 = arith.constant 0 : index
    %78 = vector.load %arg15[%c0_47, %c0_48] : memref<1x64xf32, #tpu.memory_space<vmem>>, vector<1x64xf32>
    %79 = vector.broadcast %78 : vector<1x64xf32> to vector<8x64xf32>
    %80 = arith.addf %77, %79 : vector<8x64xf32>
    %cst_49 = arith.constant 0.000000e+00 : f32
    %81 = vector.broadcast %cst_49 : f32 to vector<8x64xf32>
    %82 = arith.maximumf %80, %81 : vector<8x64xf32>
    %c0_50 = arith.constant 0 : index
    %c0_51 = arith.constant 0 : index
    %83 = vector.load %arg16[%c0_50, %c0_51] : memref<64x32xbf16, #tpu.memory_space<vmem>>, vector<64x32xbf16>
    %84 = arith.truncf %82 : vector<8x64xf32> to vector<8x64xbf16>
    %cst_52 = arith.constant dense<0.000000e+00> : vector<8x32xf32>
    %85 = tpu.matmul %84, %83, %cst_52 {dimension_numbers = #tpu.dot_dimension_numbers<[1], [0], [0], [1], [0, 0, 1, 1], [], []>} : vector<8x64xbf16>, vector<64x32xbf16>, vector<8x32xf32> -> vector<8x32xf32>
    %c0_53 = arith.constant 0 : index
    %c0_54 = arith.constant 0 : index
    %86 = vector.load %arg17[%c0_53, %c0_54] : memref<1x32xf32, #tpu.memory_space<vmem>>, vector<1x32xf32>
    %87 = vector.broadcast %86 : vector<1x32xf32> to vector<8x32xf32>
    %88 = arith.addf %85, %87 : vector<8x32xf32>
    %89 = arith.addf %74, %88 : vector<8x32xf32>
    %c0_55 = arith.constant 0 : index
    %c0_56 = arith.constant 0 : index
    %90 = vector.load %arg18[%c0_55, %c0_56] : memref<1x32xf32, #tpu.memory_space<vmem>>, vector<1x32xf32>
    %c0_57 = arith.constant 0 : index
    %c0_58 = arith.constant 0 : index
    %91 = vector.load %arg19[%c0_57, %c0_58] : memref<1x32xf32, #tpu.memory_space<vmem>>, vector<1x32xf32>
    %cst_59 = arith.constant dense<0.000000e+00> : vector<8xf32>
    %92 = vector.multi_reduction <add>, %89, %cst_59 [1] : vector<8x32xf32> to vector<8xf32>
    %93 = vector.shape_cast %92 : vector<8xf32> to vector<8x1xf32>
    %cst_60 = arith.constant 3.200000e+01 : f32
    %94 = vector.broadcast %cst_60 : f32 to vector<8x1xf32>
    %95 = arith.divf %93, %94 : vector<8x1xf32>
    %96 = vector.broadcast %95 : vector<8x1xf32> to vector<8x32xf32>
    %97 = arith.subf %89, %96 : vector<8x32xf32>
    %98 = arith.mulf %97, %97 : vector<8x32xf32>
    %cst_61 = arith.constant dense<0.000000e+00> : vector<8xf32>
    %99 = vector.multi_reduction <add>, %98, %cst_61 [1] : vector<8x32xf32> to vector<8xf32>
    %100 = vector.shape_cast %99 : vector<8xf32> to vector<8x1xf32>
    %cst_62 = arith.constant 3.200000e+01 : f32
    %101 = vector.broadcast %cst_62 : f32 to vector<8x1xf32>
    %102 = arith.divf %100, %101 : vector<8x1xf32>
    %103 = vector.broadcast %95 : vector<8x1xf32> to vector<8x32xf32>
    %104 = arith.subf %89, %103 : vector<8x32xf32>
    %cst_63 = arith.constant 9.99999974E-6 : f32
    %105 = vector.broadcast %cst_63 : f32 to vector<8x1xf32>
    %106 = arith.addf %102, %105 : vector<8x1xf32>
    %107 = math.rsqrt %106 : vector<8x1xf32>
    %108 = vector.broadcast %107 : vector<8x1xf32> to vector<8x32xf32>
    %109 = arith.mulf %104, %108 : vector<8x32xf32>
    %110 = vector.broadcast %90 : vector<1x32xf32> to vector<8x32xf32>
    %111 = arith.mulf %109, %110 : vector<8x32xf32>
    %112 = vector.broadcast %91 : vector<1x32xf32> to vector<8x32xf32>
    %113 = arith.addf %111, %112 : vector<8x32xf32>
    %c0_64 = arith.constant 0 : index
    %c0_65 = arith.constant 0 : index
    %c0_66 = arith.constant 0 : index
    %114 = vector.load %arg20[%c0_64, %c0_65, %c0_66] : memref<1x8x32xf32, #tpu.memory_space<vmem>>, vector<1x8x32xf32>
    %115 = vector.shape_cast %114 : vector<1x8x32xf32> to vector<8x32xf32>
    %116 = vector.shape_cast %113 : vector<8x32xf32> to vector<1x8x32xf32>
    tpu.vector_store %arg20[%c0_64, %c0_65, %c0_66], %116 {strides = array<i32>} : memref<1x8x32xf32, #tpu.memory_space<vmem>>, vector<1x8x32xf32>,
    return
  }
  func.func @transform_0(%arg0: i32) -> (i32, i32, i32) {
    %c0_i32 = arith.constant 0 : i32
    %c0_i32_0 = arith.constant 0 : i32
    %c0_i32_1 = arith.constant 0 : i32
    return %arg0, %c0_i32, %c0_i32_0 : i32, i32, i32
  }
  func.func @transform_1(%arg0: i32) -> (i32, i32, i32) {
    %c0_i32 = arith.constant 0 : i32
    %c0_i32_0 = arith.constant 0 : i32
    %c0_i32_1 = arith.constant 0 : i32
    return %arg0, %c0_i32, %c0_i32_0 : i32, i32, i32
  }
  func.func @transform_2(%arg0: i32) -> (i32, i32, i32) {
    %c0_i32 = arith.constant 0 : i32
    %c0_i32_0 = arith.constant 0 : i32
    %c0_i32_1 = arith.constant 0 : i32
    return %arg0, %c0_i32, %c0_i32_0 : i32, i32, i32
  }
  func.func @transform_3(%arg0: i32) -> (i32, i32) {
    %c0_i32 = arith.constant 0 : i32
    %c0_i32_0 = arith.constant 0 : i32
    %c0_i32_1 = arith.constant 0 : i32
    return %c0_i32, %c0_i32_0 : i32, i32
  }
  func.func @transform_4(%arg0: i32) -> (i32, i32) {
    %c0_i32 = arith.constant 0 : i32
    %c0_i32_0 = arith.constant 0 : i32
    %c0_i32_1 = arith.constant 0 : i32
    return %c0_i32, %c0_i32_0 : i32, i32
  }
  func.func @transform_5(%arg0: i32) -> (i32, i32) {
    %c0_i32 = arith.constant 0 : i32
    %c0_i32_0 = arith.constant 0 : i32
    %c0_i32_1 = arith.constant 0 : i32
    return %c0_i32, %c0_i32_0 : i32, i32
  }
  func.func @transform_6(%arg0: i32) -> (i32, i32) {
    %c0_i32 = arith.constant 0 : i32
    %c0_i32_0 = arith.constant 0 : i32
    %c0_i32_1 = arith.constant 0 : i32
    return %c0_i32, %c0_i32_0 : i32, i32
  }
  func.func @transform_7(%arg0: i32) -> (i32, i32) {
    %c0_i32 = arith.constant 0 : i32
    %c0_i32_0 = arith.constant 0 : i32
    %c0_i32_1 = arith.constant 0 : i32
    return %c0_i32, %c0_i32_0 : i32, i32
  }
  func.func @transform_8(%arg0: i32) -> (i32, i32) {
    %c0_i32 = arith.constant 0 : i32
    %c0_i32_0 = arith.constant 0 : i32
    %c0_i32_1 = arith.constant 0 : i32
    return %c0_i32, %c0_i32_0 : i32, i32
  }
  func.func @transform_9(%arg0: i32) -> (i32, i32) {
    %c0_i32 = arith.constant 0 : i32
    %c0_i32_0 = arith.constant 0 : i32
    %c0_i32_1 = arith.constant 0 : i32
    return %c0_i32, %c0_i32_0 : i32, i32
  }
  func.func @transform_10(%arg0: i32) -> (i32, i32) {
    %c0_i32 = arith.constant 0 : i32
    %c0_i32_0 = arith.constant 0 : i32
    %c0_i32_1 = arith.constant 0 : i32
    return %c0_i32, %c0_i32_0 : i32, i32
  }
  func.func @transform_11(%arg0: i32) -> (i32, i32) {
    %c0_i32 = arith.constant 0 : i32
    %c0_i32_0 = arith.constant 0 : i32
    %c0_i32_1 = arith.constant 0 : i32
    return %c0_i32, %c0_i32_0 : i32, i32
  }
  func.func @transform_12(%arg0: i32) -> (i32, i32) {
    %c0_i32 = arith.constant 0 : i32
    %c0_i32_0 = arith.constant 0 : i32
    %c0_i32_1 = arith.constant 0 : i32
    return %c0_i32, %c0_i32_0 : i32, i32
  }
  func.func @transform_13(%arg0: i32) -> (i32, i32) {
    %c0_i32 = arith.constant 0 : i32
    %c0_i32_0 = arith.constant 0 : i32
    %c0_i32_1 = arith.constant 0 : i32
    return %c0_i32, %c0_i32_0 : i32, i32
  }
  func.func @transform_14(%arg0: i32) -> (i32, i32) {
    %c0_i32 = arith.constant 0 : i32
    %c0_i32_0 = arith.constant 0 : i32
    %c0_i32_1 = arith.constant 0 : i32
    return %c0_i32, %c0_i32_0 : i32, i32
  }
  func.func @transform_15(%arg0: i32) -> (i32, i32) {
    %c0_i32 = arith.constant 0 : i32
    %c0_i32_0 = arith.constant 0 : i32
    %c0_i32_1 = arith.constant 0 : i32
    return %c0_i32, %c0_i32_0 : i32, i32
  }
  func.func @transform_16(%arg0: i32) -> (i32, i32) {
    %c0_i32 = arith.constant 0 : i32
    %c0_i32_0 = arith.constant 0 : i32
    %c0_i32_1 = arith.constant 0 : i32
    return %c0_i32, %c0_i32_0 : i32, i32
  }
  func.func @transform_17(%arg0: i32) -> (i32, i32) {
    %c0_i32 = arith.constant 0 : i32
    %c0_i32_0 = arith.constant 0 : i32
    %c0_i32_1 = arith.constant 0 : i32
    return %c0_i32, %c0_i32_0 : i32, i32
  }
  func.func @transform_18(%arg0: i32) -> (i32, i32) {
    %c0_i32 = arith.constant 0 : i32
    %c0_i32_0 = arith.constant 0 : i32
    %c0_i32_1 = arith.constant 0 : i32
    return %c0_i32, %c0_i32_0 : i32, i32
  }
  func.func @transform_19(%arg0: i32) -> (i32, i32, i32) {
    %c0_i32 = arith.constant 0 : i32
    %c0_i32_0 = arith.constant 0 : i32
    %c0_i32_1 = arith.constant 0 : i32
    return %arg0, %c0_i32, %c0_i32_0 : i32, i32, i32
  }
  func.func @transform_20(%arg0: i32) -> (i32, i32, i32) {
    %c0_i32 = arith.constant 0 : i32
    %c0_i32_0 = arith.constant 0 : i32
    %c0_i32_1 = arith.constant 0 : i32
    return %arg0, %c0_i32, %c0_i32_0 : i32, i32, i32
  }
}

</mosaic_0001>

<llo_original>
// kernel: module_transformer_call.1
$region0: #{module_transformer_call.1}
  #allocation0 [shape = 'u32[]', space=smem, size = 0x4, offset = 0x4, fixed_abs, tag = 'smem constant byte address 0x4 - core index']
  #allocation1 [shape = 'u32[72,128]{1,0:T(1,128)}', space=vmem, size = 0x9000, scoped, tag = 'internal scratch']
  %s0 = inlined_call_operand.vmem [shape: f32[2,8,32], index: 0, kind: input, shape index: {}]
  %s1 = inlined_call_operand.vmem [shape: f32[2,8,32], index: 1, kind: input, shape index: {}]
  %s2 = inlined_call_operand.vmem [shape: f32[2,8,32], index: 2, kind: input, shape index: {}]
  %s3 = inlined_call_operand.hbm [shape: bf16[32,32], index: 3, kind: input, shape index: {}]
  %s4 = inlined_call_operand.hbm [shape: f32[1,32], index: 4, kind: input, shape index: {}]
  %s5 = inlined_call_operand.hbm [shape: bf16[32,32], index: 5, kind: input, shape index: {}]
  %s6 = inlined_call_operand.hbm [shape: f32[1,32], index: 6, kind: input, shape index: {}]
  %s7 = inlined_call_operand.hbm [shape: bf16[32,32], index: 7, kind: input, shape index: {}]
  %s8 = inlined_call_operand.hbm [shape: f32[1,32], index: 8, kind: input, shape index: {}]
  %s9 = inlined_call_operand.vmem [shape: bf16[32,32], index: 9, kind: input, shape index: {}]
  %s10 = inlined_call_operand.vmem [shape: f32[1,32], index: 10, kind: input, shape index: {}]
  %s11 = inlined_call_operand.vmem [shape: f32[1,32], index: 11, kind: input, shape index: {}]
  %s12 = inlined_call_operand.vmem [shape: f32[1,32], index: 12, kind: input, shape index: {}]
  %s13 = inlined_call_operand.vmem [shape: bf16[32,64], index: 13, kind: input, shape index: {}]
  %s14 = inlined_call_operand.vmem [shape: f32[1,64], index: 14, kind: input, shape index: {}]
  %s15 = inlined_call_operand.vmem [shape: bf16[64,32], index: 15, kind: input, shape index: {}]
  %s16 = inlined_call_operand.vmem [shape: f32[1,32], index: 16, kind: input, shape index: {}]
  %s17 = inlined_call_operand.vmem [shape: f32[1,32], index: 17, kind: input, shape index: {}]
  %s18 = inlined_call_operand.vmem [shape: f32[1,32], index: 18, kind: input, shape index: {}]
  %s19 = inlined_call_operand.vmem [shape: f32[2,8,32], index: 19, kind: output, shape index: {0}]
  %s20 = inlined_call_operand.hbm [shape: f32[2,8,8], index: 20, kind: output, shape index: {1}]
  %21 = xla_tuple %s19, %s20
  %s22 = sld [smem:[#allocation0]]
  $region141: #{module_transformer_call.1} parent=0
    _
  %s24 = ssub.s32 1, %s22
  %s25 = scalar_select 0, %s24, %s22
  $region1: #{module_transformer_call.1} parent=0
    #allocation2 [shape = 'u8[8192]{0}', space=vmem, size = 0x2000, scoped, tag = 'input window, operand 3, single buffered']
    #allocation3 [shape = 's32[2]{0}', space=sflag, size = 0x8, scoped, tag = 'scoped memory for module_transformer_call.1']
    #allocation4 [shape = 's32[2]{0}', space=sflag, size = 0x8, scoped, tag = 'scoped memory for module_transformer_call.1']
    #allocation5 [shape = 'u8[512]{0}', space=vmem, size = 0x400, scoped, tag = 'input window, operand 4, single buffered']
    #allocation6 [shape = 's32[1]{0}', space=sflag, size = 0x4, scoped, tag = 'scoped memory for module_transformer_call.1']
    #allocation7 [shape = 'u8[8192]{0}', space=vmem, size = 0x2000, scoped, tag = 'input window, operand 5, single buffered']
    #allocation8 [shape = 'u8[512]{0}', space=vmem, size = 0x400, scoped, tag = 'input window, operand 6, single buffered']
    #allocation9 [shape = 's32[1]{0}', space=sflag, size = 0x4, scoped, tag = 'scoped memory for module_transformer_call.1']
    #allocation10 [shape = 'u8[8192]{0}', space=vmem, size = 0x2000, scoped, tag = 'input window, operand 7, single buffered']
    #allocation11 [shape = 'u8[512]{0}', space=vmem, size = 0x400, scoped, tag = 'input window, operand 8, single buffered']
    #allocation12 [shape = 's32[1]{0}', space=sflag, size = 0x4, scoped, tag = 'scoped memory for module_transformer_call.1']
    #allocation13 [shape = 'u8[8192]{0}', space=vmem, size = 0x2000, scoped, tag = 'output window, operand 1']
    %26 = vsyncpa [#allocation3], 0
    %27 = vsyncpa [#allocation6], 0
    %28 = vsyncpa [#allocation9], 0
    %29 = vsyncpa [#allocation12], 0
    %30 = vsyncpa [#allocation4], 0
    %s31 = scalar_lea.sflag [#allocation4], 1
    %32 = vsyncpa %s31, 0
    loop: start=0, step=1, limit=4
    $region2: #{module_transformer_call.1} parent=1 // loop_pre_header
      _
    $region3: #{module_transformer_call.1} parent=1 // loop_header
      %s34 = sphi 0, %s38
      %p35 = scmp.ge.s32.totalorder %s34, 4
      %s44 = sphi 0, %s46
      %s47 = sphi 0, %s44
      %s48 = sphi 0, %s47
      %s64 = sphi 0, %s48
      %s70 = sphi 0, %s72
      %s73 = sphi 0, %s70
      %s74 = sphi 0, %s73
      %s90 = sphi 0, %s74
      %s96 = sphi 0, %s98
      %s99 = sphi 0, %s96
      %s100 = sphi 0, %s99
      %s116 = sphi 0, %s100
      %s120 = sphi 0, %s120
      %s122 = sphi 0, %s120
      %s123 = sphi 0, %s122
      %s137 = sphi 0, %s123
      %s141 = sphi 0, %s141
      %s143 = sphi 0, %s141
      %s144 = sphi 0, %s143
      %s158 = sphi 0, %s144
      %s162 = sphi 0, %s162
      %s164 = sphi 0, %s162
      %s165 = sphi 0, %s164
      %s179 = sphi 0, %s165
      %s183 = sphi 0, %s183
      %s185 = sphi 0, %s183
      %s186 = sphi 0, %s185
      %s200 = sphi 0, %s186
      %s204 = sphi 0, %s204
      %s206 = sphi 0, %s204
      %s207 = sphi 0, %s206
      %s221 = sphi 0, %s207
      %s225 = sphi 0, %s225
      %s227 = sphi 0, %s225
      %s228 = sphi 0, %s227
      %s242 = sphi 0, %s228
      %s246 = sphi 0, %s246
      %s248 = sphi 0, %s246
      %s249 = sphi 0, %s248
      %s263 = sphi 0, %s249
      %s267 = sphi 0, %s267
      %s269 = sphi 0, %s267
      %s270 = sphi 0, %s269
      %s284 = sphi 0, %s270
      %s288 = sphi 0, %s288
      %s290 = sphi 0, %s288
      %s291 = sphi 0, %s290
      %s305 = sphi 0, %s291
      %s309 = sphi 0, %s309
      %s311 = sphi 0, %s309
      %s312 = sphi 0, %s311
      %s326 = sphi 0, %s312
      %s330 = sphi 0, %s330
      %s332 = sphi 0, %s330
      %s333 = sphi 0, %s332
      %s347 = sphi 0, %s333
      %s351 = sphi 0, %s351
      %s353 = sphi 0, %s351
      %s354 = sphi 0, %s353
      %s368 = sphi 0, %s354
      %s372 = sphi 0, %s372
      %s374 = sphi 0, %s372
      %s375 = sphi 0, %s374
      %s389 = sphi 0, %s375
      %s393 = sphi 0, %s393
      %s395 = sphi 0, %s393
      %s396 = sphi 0, %s395
      %s410 = sphi 0, %s396
      %s414 = sphi 0, %s414
      %s416 = sphi 0, %s414
      %s417 = sphi 0, %s416
      %s431 = sphi 0, %s417
      %s435 = sphi 0, %s435
      %s437 = sphi 0, %s435
      %s438 = sphi 0, %s437
      %s452 = sphi 0, %s438
      %s458 = sphi 0, %s460
      %s461 = sphi 0, %s458
      %s462 = sphi 0, %s461
      %s478 = sphi 0, %s462
      %s484 = sphi 0, %s486
      %s487 = sphi 0, %s484
      %s488 = sphi 0, %s487
      %s504 = sphi 0, %s488
    $region4: #{module_transformer_call.1} parent=1 // loop_header_branch
      %37 = sbr.rel (%p35) target = $region8
    $region5: #{module_transformer_call.1} parent=1 // loop_body
      %s39 = ssub.s32 %s34, 1
      %s40 = ssub.s32 %s34, 2
      %s41 = sadd.s32 %s34, 1
      %s42 = ssub.s32 %s34, %s41
      %p43 = scmp.eq.s32.totalorder %s42, 0
      %s45 = sadd.s32 %s44, 1
      %s46 = scalar_select %p43, %s44, %s45
      %p49 = pneg %p43
      %p50 = scmp.eq.s32.totalorder %s34, 1
      %p51 = por %p49, %p50
      %p52 = scmp.ne.s32.totalorder %s44, %s47
      %p53 = scmp.eq.s32.totalorder %s34, 0
      %p54 = por %p52, %p53
      %p55 = scmp.ne.s32.totalorder %s44, %s47
      %p56 = scmp.eq.s32.totalorder %s39, 1
      %p57 = por %p55, %p56
      %p58 = scmp.ne.s32.totalorder %s47, %s48
      %p59 = scmp.eq.s32.totalorder %s39, 0
      %p60 = por %p58, %p59
      %p61 = scmp.ne.s32.totalorder %s47, %s48
      %p62 = scmp.eq.s32.totalorder %s40, 1
      %p63 = por %p61, %p62
      %p65 = scmp.ne.s32.totalorder %s48, %s64
      %p66 = scmp.eq.s32.totalorder %s40, 0
      %p67 = por %p65, %p66
      %s68 = ssub.s32 %s34, %s41
      %p69 = scmp.eq.s32.totalorder %s68, 0
      %s71 = sadd.s32 %s70, 1
      %s72 = scalar_select %p69, %s70, %s71
      %p75 = pneg %p69
      %p76 = scmp.eq.s32.totalorder %s34, 1
      %p77 = por %p75, %p76
      %p78 = scmp.ne.s32.totalorder %s70, %s73
      %p79 = scmp.eq.s32.totalorder %s34, 0
      %p80 = por %p78, %p79
      %p81 = scmp.ne.s32.totalorder %s70, %s73
      %p82 = scmp.eq.s32.totalorder %s39, 1
      %p83 = por %p81, %p82
      %p84 = scmp.ne.s32.totalorder %s73, %s74
      %p85 = scmp.eq.s32.totalorder %s39, 0
      %p86 = por %p84, %p85
      %p87 = scmp.ne.s32.totalorder %s73, %s74
      %p88 = scmp.eq.s32.totalorder %s40, 1
      %p89 = por %p87, %p88
      %p91 = scmp.ne.s32.totalorder %s74, %s90
      %p92 = scmp.eq.s32.totalorder %s40, 0
      %p93 = por %p91, %p92
      %s94 = ssub.s32 %s34, %s41
      %p95 = scmp.eq.s32.totalorder %s94, 0
      %s97 = sadd.s32 %s96, 1
      %s98 = scalar_select %p95, %s96, %s97
      %p101 = pneg %p95
      %p102 = scmp.eq.s32.totalorder %s34, 1
      %p103 = por %p101, %p102
      %p104 = scmp.ne.s32.totalorder %s96, %s99
      %p105 = scmp.eq.s32.totalorder %s34, 0
      %p106 = por %p104, %p105
      %p107 = scmp.ne.s32.totalorder %s96, %s99
      %p108 = scmp.eq.s32.totalorder %s39, 1
      %p109 = por %p107, %p108
      %p110 = scmp.ne.s32.totalorder %s99, %s100
      %p111 = scmp.eq.s32.totalorder %s39, 0
      %p112 = por %p110, %p111
      %p113 = scmp.ne.s32.totalorder %s99, %s100
      %p114 = scmp.eq.s32.totalorder %s40, 1
      %p115 = por %p113, %p114
      %p117 = scmp.ne.s32.totalorder %s100, %s116
      %p118 = scmp.eq.s32.totalorder %s40, 0
      %p119 = por %p117, %p118
      %s121 = sadd.s32 %s120, 1
      %p124 = scmp.eq.s32.totalorder %s34, 1
      %p125 = scmp.ne.s32.totalorder %s120, %s122
      %p126 = scmp.eq.s32.totalorder %s34, 0
      %p127 = por %p125, %p126
      %p128 = scmp.ne.s32.totalorder %s120, %s122
      %p129 = scmp.eq.s32.totalorder %s39, 1
      %p130 = por %p128, %p129
      %p131 = scmp.ne.s32.totalorder %s122, %s123
      %p132 = scmp.eq.s32.totalorder %s39, 0
      %p133 = por %p131, %p132
      %p134 = scmp.ne.s32.totalorder %s122, %s123
      %p135 = scmp.eq.s32.totalorder %s40, 1
      %p136 = por %p134, %p135
      %p138 = scmp.ne.s32.totalorder %s123, %s137
      %p139 = scmp.eq.s32.totalorder %s40, 0
      %p140 = por %p138, %p139
      %s142 = sadd.s32 %s141, 1
      %p145 = scmp.eq.s32.totalorder %s34, 1
      %p146 = scmp.ne.s32.totalorder %s141, %s143
      %p147 = scmp.eq.s32.totalorder %s34, 0
      %p148 = por %p146, %p147
      %p149 = scmp.ne.s32.totalorder %s141, %s143
      %p150 = scmp.eq.s32.totalorder %s39, 1
      %p151 = por %p149, %p150
      %p152 = scmp.ne.s32.totalorder %s143, %s144
      %p153 = scmp.eq.s32.totalorder %s39, 0
      %p154 = por %p152, %p153
      %p155 = scmp.ne.s32.totalorder %s143, %s144
      %p156 = scmp.eq.s32.totalorder %s40, 1
      %p157 = por %p155, %p156
      %p159 = scmp.ne.s32.totalorder %s144, %s158
      %p160 = scmp.eq.s32.totalorder %s40, 0
      %p161 = por %p159, %p160
      %s163 = sadd.s32 %s162, 1
      %p166 = scmp.eq.s32.totalorder %s34, 1
      %p167 = scmp.ne.s32.totalorder %s162, %s164
      %p168 = scmp.eq.s32.totalorder %s34, 0
      %p169 = por %p167, %p168
      %p170 = scmp.ne.s32.totalorder %s162, %s164
      %p171 = scmp.eq.s32.totalorder %s39, 1
      %p172 = por %p170, %p171
      %p173 = scmp.ne.s32.totalorder %s164, %s165
      %p174 = scmp.eq.s32.totalorder %s39, 0
      %p175 = por %p173, %p174
      %p176 = scmp.ne.s32.totalorder %s164, %s165
      %p177 = scmp.eq.s32.totalorder %s40, 1
      %p178 = por %p176, %p177
      %p180 = scmp.ne.s32.totalorder %s165, %s179
      %p181 = scmp.eq.s32.totalorder %s40, 0
      %p182 = por %p180, %p181
      %s184 = sadd.s32 %s183, 1
      %p187 = scmp.eq.s32.totalorder %s34, 1
      %p188 = scmp.ne.s32.totalorder %s183, %s185
      %p189 = scmp.eq.s32.totalorder %s34, 0
      %p190 = por %p188, %p189
      %p191 = scmp.ne.s32.totalorder %s183, %s185
      %p192 = scmp.eq.s32.totalorder %s39, 1
      %p193 = por %p191, %p192
      %p194 = scmp.ne.s32.totalorder %s185, %s186
      %p195 = scmp.eq.s32.totalorder %s39, 0
      %p196 = por %p194, %p195
      %p197 = scmp.ne.s32.totalorder %s185, %s186
      %p198 = scmp.eq.s32.totalorder %s40, 1
      %p199 = por %p197, %p198
      %p201 = scmp.ne.s32.totalorder %s186, %s200
      %p202 = scmp.eq.s32.totalorder %s40, 0
      %p203 = por %p201, %p202
      %s205 = sadd.s32 %s204, 1
      %p208 = scmp.eq.s32.totalorder %s34, 1
      %p209 = scmp.ne.s32.totalorder %s204, %s206
      %p210 = scmp.eq.s32.totalorder %s34, 0
      %p211 = por %p209, %p210
      %p212 = scmp.ne.s32.totalorder %s204, %s206
      %p213 = scmp.eq.s32.totalorder %s39, 1
      %p214 = por %p212, %p213
      %p215 = scmp.ne.s32.totalorder %s206, %s207
      %p216 = scmp.eq.s32.totalorder %s39, 0
      %p217 = por %p215, %p216
      %p218 = scmp.ne.s32.totalorder %s206, %s207
      %p219 = scmp.eq.s32.totalorder %s40, 1
      %p220 = por %p218, %p219
      %p222 = scmp.ne.s32.totalorder %s207, %s221
      %p223 = scmp.eq.s32.totalorder %s40, 0
      %p224 = por %p222, %p223
      %s226 = sadd.s32 %s225, 1
      %p229 = scmp.eq.s32.totalorder %s34, 1
      %p230 = scmp.ne.s32.totalorder %s225, %s227
      %p231 = scmp.eq.s32.totalorder %s34, 0
      %p232 = por %p230, %p231
      %p233 = scmp.ne.s32.totalorder %s225, %s227
      %p234 = scmp.eq.s32.totalorder %s39, 1
      %p235 = por %p233, %p234
      %p236 = scmp.ne.s32.totalorder %s227, %s228
      %p237 = scmp.eq.s32.totalorder %s39, 0
      %p238 = por %p236, %p237
      %p239 = scmp.ne.s32.totalorder %s227, %s228
      %p240 = scmp.eq.s32.totalorder %s40, 1
      %p241 = por %p239, %p240
      %p243 = scmp.ne.s32.totalorder %s228, %s242
      %p244 = scmp.eq.s32.totalorder %s40, 0
      %p245 = por %p243, %p244
      %s247 = sadd.s32 %s246, 1
      %p250 = scmp.eq.s32.totalorder %s34, 1
      %p251 = scmp.ne.s32.totalorder %s246, %s248
      %p252 = scmp.eq.s32.totalorder %s34, 0
      %p253 = por %p251, %p252
      %p254 = scmp.ne.s32.totalorder %s246, %s248
      %p255 = scmp.eq.s32.totalorder %s39, 1
      %p256 = por %p254, %p255
      %p257 = scmp.ne.s32.totalorder %s248, %s249
      %p258 = scmp.eq.s32.totalorder %s39, 0
      %p259 = por %p257, %p258
      %p260 = scmp.ne.s32.totalorder %s248, %s249
      %p261 = scmp.eq.s32.totalorder %s40, 1
      %p262 = por %p260, %p261
      %p264 = scmp.ne.s32.totalorder %s249, %s263
      %p265 = scmp.eq.s32.totalorder %s40, 0
      %p266 = por %p264, %p265
      %s268 = sadd.s32 %s267, 1
      %p271 = scmp.eq.s32.totalorder %s34, 1
      %p272 = scmp.ne.s32.totalorder %s267, %s269
      %p273 = scmp.eq.s32.totalorder %s34, 0
      %p274 = por %p272, %p273
      %p275 = scmp.ne.s32.totalorder %s267, %s269
      %p276 = scmp.eq.s32.totalorder %s39, 1
      %p277 = por %p275, %p276
      %p278 = scmp.ne.s32.totalorder %s269, %s270
      %p279 = scmp.eq.s32.totalorder %s39, 0
      %p280 = por %p278, %p279
      %p281 = scmp.ne.s32.totalorder %s269, %s270
      %p282 = scmp.eq.s32.totalorder %s40, 1
      %p283 = por %p281, %p282
      %p285 = scmp.ne.s32.totalorder %s270, %s284
      %p286 = scmp.eq.s32.totalorder %s40, 0
      %p287 = por %p285, %p286
      %s289 = sadd.s32 %s288, 1
      %p292 = scmp.eq.s32.totalorder %s34, 1
      %p293 = scmp.ne.s32.totalorder %s288, %s290
      %p294 = scmp.eq.s32.totalorder %s34, 0
      %p295 = por %p293, %p294
      %p296 = scmp.ne.s32.totalorder %s288, %s290
      %p297 = scmp.eq.s32.totalorder %s39, 1
      %p298 = por %p296, %p297
      %p299 = scmp.ne.s32.totalorder %s290, %s291
      %p300 = scmp.eq.s32.totalorder %s39, 0
      %p301 = por %p299, %p300
      %p302 = scmp.ne.s32.totalorder %s290, %s291
      %p303 = scmp.eq.s32.totalorder %s40, 1
      %p304 = por %p302, %p303
      %p306 = scmp.ne.s32.totalorder %s291, %s305
      %p307 = scmp.eq.s32.totalorder %s40, 0
      %p308 = por %p306, %p307
      %s310 = sadd.s32 %s309, 1
      %p313 = scmp.eq.s32.totalorder %s34, 1
      %p314 = scmp.ne.s32.totalorder %s309, %s311
      %p315 = scmp.eq.s32.totalorder %s34, 0
      %p316 = por %p314, %p315
      %p317 = scmp.ne.s32.totalorder %s309, %s311
      %p318 = scmp.eq.s32.totalorder %s39, 1
      %p319 = por %p317, %p318
      %p320 = scmp.ne.s32.totalorder %s311, %s312
      %p321 = scmp.eq.s32.totalorder %s39, 0
      %p322 = por %p320, %p321
      %p323 = scmp.ne.s32.totalorder %s311, %s312
      %p324 = scmp.eq.s32.totalorder %s40, 1
      %p325 = por %p323, %p324
      %p327 = scmp.ne.s32.totalorder %s312, %s326
      %p328 = scmp.eq.s32.totalorder %s40, 0
      %p329 = por %p327, %p328
      %s331 = sadd.s32 %s330, 1
      %p334 = scmp.eq.s32.totalorder %s34, 1
      %p335 = scmp.ne.s32.totalorder %s330, %s332
      %p336 = scmp.eq.s32.totalorder %s34, 0
      %p337 = por %p335, %p336
      %p338 = scmp.ne.s32.totalorder %s330, %s332
      %p339 = scmp.eq.s32.totalorder %s39, 1
      %p340 = por %p338, %p339
      %p341 = scmp.ne.s32.totalorder %s332, %s333
      %p342 = scmp.eq.s32.totalorder %s39, 0
      %p343 = por %p341, %p342
      %p344 = scmp.ne.s32.totalorder %s332, %s333
      %p345 = scmp.eq.s32.totalorder %s40, 1
      %p346 = por %p344, %p345
      %p348 = scmp.ne.s32.totalorder %s333, %s347
      %p349 = scmp.eq.s32.totalorder %s40, 0
      %p350 = por %p348, %p349
      %s352 = sadd.s32 %s351, 1
      %p355 = scmp.eq.s32.totalorder %s34, 1
      %p356 = scmp.ne.s32.totalorder %s351, %s353
      %p357 = scmp.eq.s32.totalorder %s34, 0
      %p358 = por %p356, %p357
      %p359 = scmp.ne.s32.totalorder %s351, %s353
      %p360 = scmp.eq.s32.totalorder %s39, 1
      %p361 = por %p359, %p360
      %p362 = scmp.ne.s32.totalorder %s353, %s354
      %p363 = scmp.eq.s32.totalorder %s39, 0
      %p364 = por %p362, %p363
      %p365 = scmp.ne.s32.totalorder %s353, %s354
      %p366 = scmp.eq.s32.totalorder %s40, 1
      %p367 = por %p365, %p366
      %p369 = scmp.ne.s32.totalorder %s354, %s368
      %p370 = scmp.eq.s32.totalorder %s40, 0
      %p371 = por %p369, %p370
      %s373 = sadd.s32 %s372, 1
      %p376 = scmp.eq.s32.totalorder %s34, 1
      %p377 = scmp.ne.s32.totalorder %s372, %s374
      %p378 = scmp.eq.s32.totalorder %s34, 0
      %p379 = por %p377, %p378
      %p380 = scmp.ne.s32.totalorder %s372, %s374
      %p381 = scmp.eq.s32.totalorder %s39, 1
      %p382 = por %p380, %p381
      %p383 = scmp.ne.s32.totalorder %s374, %s375
      %p384 = scmp.eq.s32.totalorder %s39, 0
      %p385 = por %p383, %p384
      %p386 = scmp.ne.s32.totalorder %s374, %s375
      %p387 = scmp.eq.s32.totalorder %s40, 1
      %p388 = por %p386, %p387
      %p390 = scmp.ne.s32.totalorder %s375, %s389
      %p391 = scmp.eq.s32.totalorder %s40, 0
      %p392 = por %p390, %p391
      %s394 = sadd.s32 %s393, 1
      %p397 = scmp.eq.s32.totalorder %s34, 1
      %p398 = scmp.ne.s32.totalorder %s393, %s395
      %p399 = scmp.eq.s32.totalorder %s34, 0
      %p400 = por %p398, %p399
      %p401 = scmp.ne.s32.totalorder %s393, %s395
      %p402 = scmp.eq.s32.totalorder %s39, 1
      %p403 = por %p401, %p402
      %p404 = scmp.ne.s32.totalorder %s395, %s396
      %p405 = scmp.eq.s32.totalorder %s39, 0
      %p406 = por %p404, %p405
      %p407 = scmp.ne.s32.totalorder %s395, %s396
      %p408 = scmp.eq.s32.totalorder %s40, 1
      %p409 = por %p407, %p408
      %p411 = scmp.ne.s32.totalorder %s396, %s410
      %p412 = scmp.eq.s32.totalorder %s40, 0
      %p413 = por %p411, %p412
      %s415 = sadd.s32 %s414, 1
      %p418 = scmp.eq.s32.totalorder %s34, 1
      %p419 = scmp.ne.s32.totalorder %s414, %s416
      %p420 = scmp.eq.s32.totalorder %s34, 0
      %p421 = por %p419, %p420
      %p422 = scmp.ne.s32.totalorder %s414, %s416
      %p423 = scmp.eq.s32.totalorder %s39, 1
      %p424 = por %p422, %p423
      %p425 = scmp.ne.s32.totalorder %s416, %s417
      %p426 = scmp.eq.s32.totalorder %s39, 0
      %p427 = por %p425, %p426
      %p428 = scmp.ne.s32.totalorder %s416, %s417
      %p429 = scmp.eq.s32.totalorder %s40, 1
      %p430 = por %p428, %p429
      %p432 = scmp.ne.s32.totalorder %s417, %s431
      %p433 = scmp.eq.s32.totalorder %s40, 0
      %p434 = por %p432, %p433
      %s436 = sadd.s32 %s435, 1
      %p439 = scmp.eq.s32.totalorder %s34, 1
      %p440 = scmp.ne.s32.totalorder %s435, %s437
      %p441 = scmp.eq.s32.totalorder %s34, 0
      %p442 = por %p440, %p441
      %p443 = scmp.ne.s32.totalorder %s435, %s437
      %p444 = scmp.eq.s32.totalorder %s39, 1
      %p445 = por %p443, %p444
      %p446 = scmp.ne.s32.totalorder %s437, %s438
      %p447 = scmp.eq.s32.totalorder %s39, 0
      %p448 = por %p446, %p447
      %p449 = scmp.ne.s32.totalorder %s437, %s438
      %p450 = scmp.eq.s32.totalorder %s40, 1
      %p451 = por %p449, %p450
      %p453 = scmp.ne.s32.totalorder %s438, %s452
      %p454 = scmp.eq.s32.totalorder %s40, 0
      %p455 = por %p453, %p454
      %s456 = ssub.s32 %s34, %s41
      %p457 = scmp.eq.s32.totalorder %s456, 0
      %s459 = sadd.s32 %s458, 1
      %s460 = scalar_select %p457, %s458, %s459
      %p463 = pneg %p457
      %p464 = scmp.eq.s32.totalorder %s34, 1
      %p465 = por %p463, %p464
      %p466 = scmp.ne.s32.totalorder %s458, %s461
      %p467 = scmp.eq.s32.totalorder %s34, 0
      %p468 = por %p466, %p467
      %p469 = scmp.ne.s32.totalorder %s458, %s461
      %p470 = scmp.eq.s32.totalorder %s39, 1
      %p471 = por %p469, %p470
      %p472 = scmp.ne.s32.totalorder %s461, %s462
      %p473 = scmp.eq.s32.totalorder %s39, 0
      %p474 = por %p472, %p473
      %p475 = scmp.ne.s32.totalorder %s461, %s462
      %p476 = scmp.eq.s32.totalorder %s40, 1
      %p477 = por %p475, %p476
      %p479 = scmp.ne.s32.totalorder %s462, %s478
      %p480 = scmp.eq.s32.totalorder %s40, 0
      %p481 = por %p479, %p480
      %s482 = ssub.s32 %s34, %s41
      %p483 = scmp.eq.s32.totalorder %s482, 0
      %s485 = sadd.s32 %s484, 1
      %s486 = scalar_select %p483, %s484, %s485
      %p489 = pneg %p483
      %p490 = scmp.eq.s32.totalorder %s34, 1
      %p491 = por %p489, %p490
      %p492 = scmp.ne.s32.totalorder %s484, %s487
      %p493 = scmp.eq.s32.totalorder %s34, 0
      %p494 = por %p492, %p493
      %p495 = scmp.ne.s32.totalorder %s484, %s487
      %p496 = scmp.eq.s32.totalorder %s39, 1
      %p497 = por %p495, %p496
      %p498 = scmp.ne.s32.totalorder %s487, %s488
      %p499 = scmp.eq.s32.totalorder %s39, 0
      %p500 = por %p498, %p499
      %p501 = scmp.ne.s32.totalorder %s487, %s488
      %p502 = scmp.eq.s32.totalorder %s40, 1
      %p503 = por %p501, %p502
      %p505 = scmp.ne.s32.totalorder %s488, %s504
      %p506 = scmp.eq.s32.totalorder %s40, 0
      %p507 = por %p505, %p506
      %p508 = scmp.le.s32.totalorder 1, %s34
      %p509 = scmp.lt.s32.totalorder %s34, 3
      %p510 = pnand %p508, %p509
      %p511 = pneg %p510
      // Predicated region
      $region9: #{module_transformer_call.1} parent=5 // pred_check
        _
      $region10: #{module_transformer_call.1} parent=5 // pred_check_branch
        %513 = sbr.rel (%p510) target = $region12
      $region11: #{module_transformer_call.1} parent=5 // pred_region
        %s514 = ssub.s32 %s34, 1
        // Predicated region
        $region13: #{module_transformer_call.1} parent=11 // pred_check
          %p515 = pneg %p133
        $region14: #{module_transformer_call.1} parent=11 // pred_check_branch
          %517 = sbr.rel (%p515) target = $region16
        $region15: #{module_transformer_call.1} parent=11 // pred_region
          %519 = vsyncadd [#allocation3], 0
          %s520 = sshll.u32 %s3, 4
          %s521 = int_to_ptr.hbm [resolvable:$true] %s520
          %s522 = sshll.u32 [#allocation2], 4
          %s523 = int_to_ptr.vmem [resolvable:$true] %s522
          %528 = dma.hbm_to_vmem [thread:$0]  %s521, 256, %s523, [#allocation3], 64, 64, 4
        $region16: #{module_transformer_call.1} parent=11 // pred_fallthru
          _
        // Predicated region
        $region17: #{module_transformer_call.1} parent=11 // pred_check
          %p529 = pneg %p154
        $region18: #{module_transformer_call.1} parent=11 // pred_check_branch
          %531 = sbr.rel (%p529) target = $region20
        $region19: #{module_transformer_call.1} parent=11 // pred_region
          %533 = vsyncadd [#allocation6], 0
          %s535 = sshll.u32 %s4, 4
          %s536 = int_to_ptr.hbm [resolvable:$true] %s535
          %s537 = sshll.u32 [#allocation5], 4
          %s538 = int_to_ptr.vmem [resolvable:$true] %s537
          %540 = dma.hbm_to_vmem [thread:$0]  %s536, 16, %s538, [#allocation6]
        $region20: #{module_transformer_call.1} parent=11 // pred_fallthru
          _
        // Predicated region
        $region21: #{module_transformer_call.1} parent=11 // pred_check
          %p541 = pneg %p175
        $region22: #{module_transformer_call.1} parent=11 // pred_check_branch
          %543 = sbr.rel (%p541) target = $region24
        $region23: #{module_transformer_call.1} parent=11 // pred_region
          %545 = vsyncadd [#allocation6], 0
          %s546 = sshll.u32 %s5, 4
          %s547 = int_to_ptr.hbm [resolvable:$true] %s546
          %s548 = sshll.u32 [#allocation7], 4
          %s549 = int_to_ptr.vmem [resolvable:$true] %s548
          %554 = dma.hbm_to_vmem [thread:$0]  %s547, 256, %s549, [#allocation6], 64, 64, 4
        $region24: #{module_transformer_call.1} parent=11 // pred_fallthru
          _
        // Predicated region
        $region25: #{module_transformer_call.1} parent=11 // pred_check
          %p555 = pneg %p196
        $region26: #{module_transformer_call.1} parent=11 // pred_check_branch
          %557 = sbr.rel (%p555) target = $region28
        $region27: #{module_transformer_call.1} parent=11 // pred_region
          %559 = vsyncadd [#allocation9], 0
          %s561 = sshll.u32 %s6, 4
          %s562 = int_to_ptr.hbm [resolvable:$true] %s561
          %s563 = sshll.u32 [#allocation8], 4
          %s564 = int_to_ptr.vmem [resolvable:$true] %s563
          %566 = dma.hbm_to_vmem [thread:$0]  %s562, 16, %s564, [#allocation9]
        $region28: #{module_transformer_call.1} parent=11 // pred_fallthru
          _
        // Predicated region
        $region29: #{module_transformer_call.1} parent=11 // pred_check
          %p567 = pneg %p217
        $region30: #{module_transformer_call.1} parent=11 // pred_check_branch
          %569 = sbr.rel (%p567) target = $region32
        $region31: #{module_transformer_call.1} parent=11 // pred_region
          %571 = vsyncadd [#allocation9], 0
          %s572 = sshll.u32 %s7, 4
          %s573 = int_to_ptr.hbm [resolvable:$true] %s572
          %s574 = sshll.u32 [#allocation10], 4
          %s575 = int_to_ptr.vmem [resolvable:$true] %s574
          %580 = dma.hbm_to_vmem [thread:$0]  %s573, 256, %s575, [#allocation9], 64, 64, 4
        $region32: #{module_transformer_call.1} parent=11 // pred_fallthru
          _
        // Predicated region
        $region33: #{module_transformer_call.1} parent=11 // pred_check
          %p581 = pneg %p238
        $region34: #{module_transformer_call.1} parent=11 // pred_check_branch
          %583 = sbr.rel (%p581) target = $region36
        $region35: #{module_transformer_call.1} parent=11 // pred_region
          %585 = vsyncadd [#allocation12], 0
          %s587 = sshll.u32 %s8, 4
          %s588 = int_to_ptr.hbm [resolvable:$true] %s587
          %s589 = sshll.u32 [#allocation11], 4
          %s590 = int_to_ptr.vmem [resolvable:$true] %s589
          %592 = dma.hbm_to_vmem [thread:$0]  %s588, 16, %s590, [#allocation12]
        $region36: #{module_transformer_call.1} parent=11 // pred_fallthru
          _
        // Predicated region
        $region37: #{module_transformer_call.1} parent=11 // pred_check
          %p593 = pneg %p259
        $region38: #{module_transformer_call.1} parent=11 // pred_check_branch
          %595 = sbr.rel (%p593) target = $region40
        $region39: #{module_transformer_call.1} parent=11 // pred_region
          _
        $region40: #{module_transformer_call.1} parent=11 // pred_fallthru
          _
        // Predicated region
        $region41: #{module_transformer_call.1} parent=11 // pred_check
          %p596 = pneg %p280
        $region42: #{module_transformer_call.1} parent=11 // pred_check_branch
          %598 = sbr.rel (%p596) target = $region44
        $region43: #{module_transformer_call.1} parent=11 // pred_region
          _
        $region44: #{module_transformer_call.1} parent=11 // pred_fallthru
          _
        // Predicated region
        $region45: #{module_transformer_call.1} parent=11 // pred_check
          %p599 = pneg %p301
        $region46: #{module_transformer_call.1} parent=11 // pred_check_branch
          %601 = sbr.rel (%p599) target = $region48
        $region47: #{module_transformer_call.1} parent=11 // pred_region
          _
        $region48: #{module_transformer_call.1} parent=11 // pred_fallthru
          _
        // Predicated region
        $region49: #{module_transformer_call.1} parent=11 // pred_check
          %p602 = pneg %p322
        $region50: #{module_transformer_call.1} parent=11 // pred_check_branch
          %604 = sbr.rel (%p602) target = $region52
        $region51: #{module_transformer_call.1} parent=11 // pred_region
          _
        $region52: #{module_transformer_call.1} parent=11 // pred_fallthru
          _
        // Predicated region
        $region53: #{module_transformer_call.1} parent=11 // pred_check
          %p605 = pneg %p343
        $region54: #{module_transformer_call.1} parent=11 // pred_check_branch
          %607 = sbr.rel (%p605) target = $region56
        $region55: #{module_transformer_call.1} parent=11 // pred_region
          _
        $region56: #{module_transformer_call.1} parent=11 // pred_fallthru
          _
        // Predicated region
        $region57: #{module_transformer_call.1} parent=11 // pred_check
          %p608 = pneg %p364
        $region58: #{module_transformer_call.1} parent=11 // pred_check_branch
          %610 = sbr.rel (%p608) target = $region60
        $region59: #{module_transformer_call.1} parent=11 // pred_region
          _
        $region60: #{module_transformer_call.1} parent=11 // pred_fallthru
          _
        // Predicated region
        $region61: #{module_transformer_call.1} parent=11 // pred_check
          %p611 = pneg %p385
        $region62: #{module_transformer_call.1} parent=11 // pred_check_branch
          %613 = sbr.rel (%p611) target = $region64
        $region63: #{module_transformer_call.1} parent=11 // pred_region
          _
        $region64: #{module_transformer_call.1} parent=11 // pred_fallthru
          _
        // Predicated region
        $region65: #{module_transformer_call.1} parent=11 // pred_check
          %p614 = pneg %p406
        $region66: #{module_transformer_call.1} parent=11 // pred_check_branch
          %616 = sbr.rel (%p614) target = $region68
        $region67: #{module_transformer_call.1} parent=11 // pred_region
          _
        $region68: #{module_transformer_call.1} parent=11 // pred_fallthru
          _
        // Predicated region
        $region69: #{module_transformer_call.1} parent=11 // pred_check
          %p617 = pneg %p427
        $region70: #{module_transformer_call.1} parent=11 // pred_check_branch
          %619 = sbr.rel (%p617) target = $region72
        $region71: #{module_transformer_call.1} parent=11 // pred_region
          _
        $region72: #{module_transformer_call.1} parent=11 // pred_fallthru
          _
        // Predicated region
        $region73: #{module_transformer_call.1} parent=11 // pred_check
          %p620 = pneg %p448
        $region74: #{module_transformer_call.1} parent=11 // pred_check_branch
          %622 = sbr.rel (%p620) target = $region76
        $region75: #{module_transformer_call.1} parent=11 // pred_region
          _
        $region76: #{module_transformer_call.1} parent=11 // pred_fallthru
          _
      $region12: #{module_transformer_call.1} parent=5 // pred_fallthru
        _
      %p623 = scmp.lt.s32.totalorder %s34, 2
      // Predicated region
      $region77: #{module_transformer_call.1} parent=5 // pred_check
        %p624 = pneg %p623
      $region78: #{module_transformer_call.1} parent=5 // pred_check_branch
        %626 = sbr.rel (%p624) target = $region80
      $region79: #{module_transformer_call.1} parent=5 // pred_region
        // Predicated region
        $region81: #{module_transformer_call.1} parent=79 // pred_check
          %p627 = pneg %p54
        $region82: #{module_transformer_call.1} parent=79 // pred_check_branch
          %629 = sbr.rel (%p627) target = $region84
        $region83: #{module_transformer_call.1} parent=79 // pred_region
          %p630 = scmp.lt.s32.totalorder %s34, 1
          %s631 = scalar_select %p630, %s34, 1
          %s632 = smul.addr %s631, 8
          %s633 = scalar_lea.vmem %s0, %s632
        $region84: #{module_transformer_call.1} parent=79 // pred_fallthru
          _
        // Predicated region
        $region85: #{module_transformer_call.1} parent=79 // pred_check
          %p634 = pneg %p80
        $region86: #{module_transformer_call.1} parent=79 // pred_check_branch
          %636 = sbr.rel (%p634) target = $region88
        $region87: #{module_transformer_call.1} parent=79 // pred_region
          %p637 = scmp.lt.s32.totalorder %s34, 1
          %s638 = scalar_select %p637, %s34, 1
          %s639 = smul.addr %s638, 8
          %s640 = scalar_lea.vmem %s1, %s639
        $region88: #{module_transformer_call.1} parent=79 // pred_fallthru
          _
        // Predicated region
        $region89: #{module_transformer_call.1} parent=79 // pred_check
          %p641 = pneg %p106
        $region90: #{module_transformer_call.1} parent=79 // pred_check_branch
          %643 = sbr.rel (%p641) target = $region92
        $region91: #{module_transformer_call.1} parent=79 // pred_region
          %p644 = scmp.lt.s32.totalorder %s34, 1
          %s645 = scalar_select %p644, %s34, 1
          %s646 = smul.addr %s645, 8
          %s647 = scalar_lea.vmem %s2, %s646
        $region92: #{module_transformer_call.1} parent=79 // pred_fallthru
          _
      $region80: #{module_transformer_call.1} parent=5 // pred_fallthru
        _
      %p648 = scmp.le.s32.totalorder 1, %s34
      %p649 = scmp.lt.s32.totalorder %s34, 3
      %p650 = pnand %p648, %p649
      %p651 = pneg %p650
      // Predicated region
      $region93: #{module_transformer_call.1} parent=5 // pred_check
        _
      $region94: #{module_transformer_call.1} parent=5 // pred_check_branch
        %653 = sbr.rel (%p650) target = $region96
      $region95: #{module_transformer_call.1} parent=5 // pred_region
        %s654 = ssub.s32 %s34, 1
        // Predicated region
        $region97: #{module_transformer_call.1} parent=95 // pred_check
          %p655 = pneg %p133
        $region98: #{module_transformer_call.1} parent=95 // pred_check_branch
          %657 = sbr.rel (%p655) target = $region100
        $region99: #{module_transformer_call.1} parent=95 // pred_region
          %659 = dma.done [#allocation3], 256
        $region100: #{module_transformer_call.1} parent=95 // pred_fallthru
          _
        // Predicated region
        $region101: #{module_transformer_call.1} parent=95 // pred_check
          %p660 = pneg %p154
        $region102: #{module_transformer_call.1} parent=95 // pred_check_branch
          %662 = sbr.rel (%p660) target = $region104
        $region103: #{module_transformer_call.1} parent=95 // pred_region
          %664 = dma.done [#allocation6], 16
        $region104: #{module_transformer_call.1} parent=95 // pred_fallthru
          _
        // Predicated region
        $region105: #{module_transformer_call.1} parent=95 // pred_check
          %p665 = pneg %p175
        $region106: #{module_transformer_call.1} parent=95 // pred_check_branch
          %667 = sbr.rel (%p665) target = $region108
        $region107: #{module_transformer_call.1} parent=95 // pred_region
          %669 = dma.done [#allocation6], 256
        $region108: #{module_transformer_call.1} parent=95 // pred_fallthru
          _
        // Predicated region
        $region109: #{module_transformer_call.1} parent=95 // pred_check
          %p670 = pneg %p196
        $region110: #{module_transformer_call.1} parent=95 // pred_check_branch
          %672 = sbr.rel (%p670) target = $region112
        $region111: #{module_transformer_call.1} parent=95 // pred_region
          %674 = dma.done [#allocation9], 16
        $region112: #{module_transformer_call.1} parent=95 // pred_fallthru
          _
        // Predicated region
        $region113: #{module_transformer_call.1} parent=95 // pred_check
          %p675 = pneg %p217
        $region114: #{module_transformer_call.1} parent=95 // pred_check_branch
          %677 = sbr.rel (%p675) target = $region116
        $region115: #{module_transformer_call.1} parent=95 // pred_region
          %679 = dma.done [#allocation9], 256
        $region116: #{module_transformer_call.1} parent=95 // pred_fallthru
          _
        // Predicated region
        $region117: #{module_transformer_call.1} parent=95 // pred_check
          %p680 = pneg %p238
        $region118: #{module_transformer_call.1} parent=95 // pred_check_branch
          %682 = sbr.rel (%p680) target = $region120
        $region119: #{module_transformer_call.1} parent=95 // pred_region
          %684 = dma.done [#allocation12], 16
        $region120: #{module_transformer_call.1} parent=95 // pred_fallthru
          _
        %p685 = scmp.lt.s32.totalorder %s39, 1
        %s686 = scalar_select %p685, %s39, 1
        %s687 = smul.addr %s686, 8
        %s688 = scalar_lea.vmem %s0, %s687
        %p689 = pneg %p60
        %p690 = pneg %p57
        %p691 = scmp.lt.s32.totalorder %s39, 1
        %s692 = scalar_select %p691, %s39, 1
        %s693 = smul.addr %s692, 8
        %s694 = scalar_lea.vmem %s1, %s693
        %p695 = pneg %p86
        %p696 = pneg %p83
        %p697 = scmp.lt.s32.totalorder %s39, 1
        %s698 = scalar_select %p697, %s39, 1
        %s699 = smul.addr %s698, 8
        %s700 = scalar_lea.vmem %s2, %s699
        %p701 = pneg %p112
        %p702 = pneg %p109
        %p703 = pneg %p133
        %p704 = pneg %p130
        %p705 = pneg %p154
        %p706 = pneg %p151
        %p707 = pneg %p175
        %p708 = pneg %p172
        %p709 = pneg %p196
        %p710 = pneg %p193
        %p711 = pneg %p217
        %p712 = pneg %p214
        %p713 = pneg %p238
        %p714 = pneg %p235
        %p715 = pneg %p259
        %p716 = pneg %p256
        %p717 = pneg %p280
        %p718 = pneg %p277
        %p719 = pneg %p301
        %p720 = pneg %p298
        %p721 = pneg %p322
        %p722 = pneg %p319
        %p723 = pneg %p343
        %p724 = pneg %p340
        %p725 = pneg %p364
        %p726 = pneg %p361
        %p727 = pneg %p385
        %p728 = pneg %p382
        %p729 = pneg %p406
        %p730 = pneg %p403
        %p731 = pneg %p427
        %p732 = pneg %p424
        %p733 = pneg %p448
        %p734 = pneg %p445
        %p735 = pneg %p474
        %p736 = pneg %p471
        %p737 = scmp.lt.s32.totalorder %s39, 1
        %s738 = scalar_select %p737, %s39, 1
        %s739 = smul.addr %s738, 8
        %s740 = scalar_lea.vmem %s19, %s739
        %p741 = pneg %p500
        %p742 = pneg %p497
        %s743 = sand.u32 %s487, 1
        %s744 = scalar_lea.sflag [#allocation4], %s743
        %s745 = sand.u32 %s487, 1
        %s746 = smul.addr %s745, 8
        %s747 = scalar_lea.vmem [#allocation13], %s746
        %p748 = scmp.lt.s32.totalorder %s39, 1
        %s749 = scalar_select %p748, %s39, 1
        %s750 = smul.addr %s749, 8
        %s751 = scalar_lea.vmem %s0, %s750
        %p752 = scmp.lt.s32.totalorder %s39, 1
        %s753 = scalar_select %p752, %s39, 1
        %s754 = smul.addr %s753, 8
        %s755 = scalar_lea.vmem %s1, %s754
        %p756 = scmp.lt.s32.totalorder %s39, 1
        %s757 = scalar_select %p756, %s39, 1
        %s758 = smul.addr %s757, 8
        %s759 = scalar_lea.vmem %s2, %s758
        %p760 = scmp.lt.s32.totalorder %s39, 1
        %s761 = scalar_select %p760, %s39, 1
        %s762 = smul.addr %s761, 8
        %s763 = scalar_lea.vmem %s19, %s762
        %v765 = vld [vmem:[%s751] sm:$0xff]
        %v766 = vld [vmem:[%s755] sm:$0xff]
        %v767 = vld [vmem:[%s759] sm:$0xff]
        %v768 = vld [vmem:[#allocation2] sm:$0xf]
        %v769 = vld [vmem:[#allocation2 + $0x4] sm:$0xf]
        %v770 = vld [vmem:[#allocation2 + $0x8] sm:$0xf]
        %v771 = vld [vmem:[#allocation2 + $0xc] sm:$0xf]
        %v772 = vpack.c.bf16 %v765, %v765
        %v773 = vld [vmem:[#allocation5] sm:$0x1]
        %v775 = vperm.slane %v773, 0
        %v781 = vunpack.c.l.b16 %v768
        %v782 = vunpack.c.l.b16 %v769
        %v783 = vunpack.c.l.b16 %v770
        %v784 = vunpack.c.l.b16 %v771
        %v785 = vpack.c.b16 %v782, %v781
        %v786 = vpack.c.b16 %v784, %v783
        %vm789 = vcmask 261120
        %v791 = vsel %vm789, %v772, 0
        %793 = vmatpush.bf16.msra.mxu0 0
        %794 = vmatpush.bf16.msra.mxu0 0
        %795 = vmatpush.bf16.msra.mxu0 0
        %796 = vmatpush.bf16.msra.mxu0 0
        %797 = vmatpush.bf16.msra.mxu0 0
        %798 = vmatpush.bf16.msra.mxu0 0
        %799 = vmatpush.bf16.msra.mxu0 %v786
        %800 = vmatpush.bf16.msra.mxu0 %v785
        %801 = vmatmul.bf16.gmra.mxu0 %v791
        %v802 = vpop.f32.mrf.mxu0
        %v803 = vadd.f32 %v775, %v802
        %v804 = vpop.f32.mrf.mxu0
        %805 = vdwg.mxu0
        %v806 = vld [vmem:[#allocation7] sm:$0xf]
        %v807 = vld [vmem:[#allocation7 + $0x4] sm:$0xf]
        %v808 = vld [vmem:[#allocation7 + $0x8] sm:$0xf]
        %v809 = vld [vmem:[#allocation7 + $0xc] sm:$0xf]
        %v810 = vpack.c.bf16 %v766, %v766
        %v811 = vld [vmem:[#allocation8] sm:$0x1]
        %v813 = vperm.slane %v811, 0
        %v819 = vunpack.c.l.b16 %v806
        %v820 = vunpack.c.l.b16 %v807
        %v821 = vunpack.c.l.b16 %v808
        %v822 = vunpack.c.l.b16 %v809
        %v823 = vpack.c.b16 %v820, %v819
        %v824 = vpack.c.b16 %v822, %v821
        %v828 = vsel %vm789, %v810, 0
        %830 = vmatpush.bf16.msra.mxu0 0
        %831 = vmatpush.bf16.msra.mxu0 0
        %832 = vmatpush.bf16.msra.mxu0 0
        %833 = vmatpush.bf16.msra.mxu0 0
        %834 = vmatpush.bf16.msra.mxu0 0
        %835 = vmatpush.bf16.msra.mxu0 0
        %836 = vmatpush.bf16.msra.mxu0 %v824
        %837 = vmatpush.bf16.msra.mxu0 %v823
        %838 = vmatmul.bf16.gmra.mxu0 %v828
        %v839 = vpop.f32.mrf.mxu0
        %v840 = vadd.f32 %v813, %v839
        %v841 = vpop.f32.mrf.mxu0
        %842 = vdwg.mxu0
        %v843 = vld [vmem:[#allocation10] sm:$0xf]
        %v844 = vld [vmem:[#allocation10 + $0x4] sm:$0xf]
        %v845 = vld [vmem:[#allocation10 + $0x8] sm:$0xf]
        %v846 = vld [vmem:[#allocation10 + $0xc] sm:$0xf]
        %v847 = vpack.c.bf16 %v767, %v767
        %v848 = vld [vmem:[#allocation11] sm:$0x1]
        %v850 = vperm.slane %v848, 0
        %v856 = vunpack.c.l.b16 %v843
        %v857 = vunpack.c.l.b16 %v844
        %v858 = vunpack.c.l.b16 %v845
        %v859 = vunpack.c.l.b16 %v846
        %v860 = vpack.c.b16 %v857, %v856
        %v861 = vpack.c.b16 %v859, %v858
        %v865 = vsel %vm789, %v847, 0
        %867 = vmatpush.bf16.msra.mxu0 0
        %868 = vmatpush.bf16.msra.mxu0 0
        %869 = vmatpush.bf16.msra.mxu0 0
        %870 = vmatpush.bf16.msra.mxu0 0
        %871 = vmatpush.bf16.msra.mxu0 0
        %872 = vmatpush.bf16.msra.mxu0 0
        %873 = vmatpush.bf16.msra.mxu0 %v861
        %874 = vmatpush.bf16.msra.mxu0 %v860
        %875 = vmatmul.bf16.gmra.mxu0 %v865
        %v876 = vpop.f32.mrf.mxu0
        %v877 = vadd.f32 %v850, %v876
        %v878 = vpop.f32.mrf.mxu0
        %879 = vdwg.mxu0
        %v880 = vpack.c.bf16 %v803, %v803
        %v881 = vpack.c.bf16 %v840, %v840
        %v883 = vsel %vm789, %v880, 0
        %v886 = vsel %vm789, %v881, 0
        %888 = vmatpush.bf16.xpose.msra.mxu0 0
        %889 = vmatpush.bf16.xpose.msra.mxu0 0
        %890 = vmatpush.bf16.xpose.msra.mxu0 0
        %891 = vmatpush.bf16.xpose.msra.mxu0 0
        %892 = vmatpush.bf16.xpose.msra.mxu0 0
        %893 = vmatpush.bf16.xpose.msra.mxu0 0
        %894 = vmatpush.bf16.xpose.msra.mxu0 0
        %895 = vmatpush.bf16.xpose.msra.mxu0 %v886
        %896 = vmatmul.bf16.gmra.mxu0 %v883
        %v897 = vpop.f32.mrf.mxu0
        %v898 = vadd.f32 0.0, %v897
        %v899 = vpop.f32.mrf.mxu0
        %900 = vdwg.mxu0
        %v901 = vmul.f32 %v898, 0.17677669
        %vm902 = vcmask 64512
        %v903 = vsel %vm902, %v901, -inf
        %904 = vmax.xlane.f32.xlu0 %v903
        %v905 = vpop.xlane.xlu0 %904
        %v906 = vsub.f32 %v901, %v905
        %v907 = vmul.f32 %v906, 1.442695
        %v908 = vpow.pop %v907
        %v909 = vsel %vm902, %v908, 0.0
        %910 = vadd.xlane.f32.xlu0 %v909
        %v911 = vpop.xlane.xlu0 %910
        %v912 = vrcp.pop %v911
        %v913 = vmul.f32 %v908, %v912
        %914 = vst.msk [vmem:[%s747] sm:$0xff] %vm902, %v913
        %v915 = vpack.c.bf16 %v913, %v913
        %v916 = vpack.c.bf16 %v877, %v877
        %v918 = vsel %vm902, %v915, 0
        %vm920 = vcmask 1043456
        %v922 = vsel %vm920, %v916, 0
        %924 = vmatpush.bf16.msra.mxu0 0
        %925 = vmatpush.bf16.msra.mxu0 0
        %926 = vmatpush.bf16.msra.mxu0 0
        %927 = vmatpush.bf16.msra.mxu0 0
        %928 = vmatpush.bf16.msra.mxu0 0
        %929 = vmatpush.bf16.msra.mxu0 0
        %930 = vmatpush.bf16.msra.mxu0 0
        %931 = vmatpush.bf16.msra.mxu0 %v922
        %932 = vmatmul.bf16.gmra.mxu0 %v918
        %v933 = vpop.f32.mrf.mxu0
        %v934 = vadd.f32 0.0, %v933
        %v935 = vpop.f32.mrf.mxu0
        %936 = vdwg.mxu0
        %v937 = vld [vmem:[%s9] sm:$0xf]
        %v938 = vld [vmem:[%s9 + $0x4] sm:$0xf]
        %v939 = vld [vmem:[%s9 + $0x8] sm:$0xf]
        %v940 = vld [vmem:[%s9 + $0xc] sm:$0xf]
        %v941 = vpack.c.bf16 %v934, %v934
        %v942 = vld [vmem:[%s10] sm:$0x1]
        %v944 = vperm.slane %v942, 0
        %v950 = vunpack.c.l.b16 %v937
        %v951 = vunpack.c.l.b16 %v938
        %v952 = vunpack.c.l.b16 %v939
        %v953 = vunpack.c.l.b16 %v940
        %v954 = vpack.c.b16 %v951, %v950
        %v955 = vpack.c.b16 %v953, %v952
        %v959 = vsel %vm789, %v941, 0
        %961 = vmatpush.bf16.msra.mxu0 0
        %962 = vmatpush.bf16.msra.mxu0 0
        %963 = vmatpush.bf16.msra.mxu0 0
        %964 = vmatpush.bf16.msra.mxu0 0
        %965 = vmatpush.bf16.msra.mxu0 0
        %966 = vmatpush.bf16.msra.mxu0 0
        %967 = vmatpush.bf16.msra.mxu0 %v955
        %968 = vmatpush.bf16.msra.mxu0 %v954
        %969 = vmatmul.bf16.gmra.mxu0 %v959
        %v970 = vpop.f32.mrf.mxu0
        %v971 = vadd.f32 %v944, %v970
        %v972 = vpop.f32.mrf.mxu0
        %973 = vdwg.mxu0
        %v974 = vld [vmem:[%s11] sm:$0x1]
        %v975 = vld [vmem:[%s12] sm:$0x1]
        %v976 = vsel %vm789, %v971, 0.0
        %977 = vadd.xlane.f32.xlu0 %v976
        %v978 = vpop.xlane.xlu0 %977
        %v979 = vrcp.pop 32.0
        %v980 = vmul.f32 32.0, %v979
        %v981 = vsub.f32 1.0, %v980
        %v982 = vmul.f32 %v979, %v981
        %v983 = vadd.f32 %v979, %v982
        %vm984 = vweird.f32 %v979
        %v985 = vsel %vm984, %v979, %v983
        %v986 = vmul.f32 %v978, %v985
        %v987 = vsub.f32 %v971, %v986
        %v988 = vmul.f32 %v987, %v987
        %v989 = vsel %vm789, %v988, 0.0
        %990 = vadd.xlane.f32.xlu0 %v989
        %v991 = vpop.xlane.xlu0 %990
        %v992 = vmul.f32 %v991, %v985
        %v993 = vadd.f32 %v992, 1e-05
        %v994 = vrsqrt.pop %v993
        %v995 = vmul.f32 %v994, %v993
        %v996 = vmul.f32 %v995, %v994
        %v997 = vmul.f32 0.5, %v996
        %v998 = vsub.f32 1.5, %v997
        %v999 = vmul.f32 %v994, %v998
        %vm1000 = vweird.f32 %v993
        %vm1001 = vweird.f32 %v994
        %vm1002 = vmor %vm1000, %vm1001
        %v1003 = vsel %vm1002, %v994, %v999
        %v1004 = vmul.f32 %v987, %v1003
        %v1006 = vperm.slane %v974, 0
        %v1008 = vmul.f32 %v1004, %v1006
        %v1010 = vperm.slane %v975, 0
        %v1012 = vadd.f32 %v1008, %v1010
        %v1013 = vld [vmem:[%s13] sm:$0xf]
        %v1014 = vld [vmem:[%s13 + $0x4] sm:$0xf]
        %v1015 = vld [vmem:[%s13 + $0x8] sm:$0xf]
        %v1016 = vld [vmem:[%s13 + $0xc] sm:$0xf]
        %v1017 = vpack.c.bf16 %v1012, %v1012
        %v1018 = vld [vmem:[%s14] sm:$0x1]
        %v1020 = vperm.slane %v1018, 0
        %v1026 = vunpack.c.l.b16 %v1013
        %v1027 = vunpack.c.l.b16 %v1014
        %v1028 = vunpack.c.l.b16 %v1015
        %v1029 = vunpack.c.l.b16 %v1016
        %v1030 = vpack.c.b16 %v1027, %v1026
        %v1031 = vpack.c.b16 %v1029, %v1028
        %v1035 = vsel %vm789, %v1017, 0
        %1037 = vmatpush.bf16.msra.mxu0 0
        %1038 = vmatpush.bf16.msra.mxu0 0
        %1039 = vmatpush.bf16.msra.mxu0 0
        %1040 = vmatpush.bf16.msra.mxu0 0
        %1041 = vmatpush.bf16.msra.mxu0 0
        %1042 = vmatpush.bf16.msra.mxu0 0
        %1043 = vmatpush.bf16.msra.mxu0 %v1031
        %1044 = vmatpush.bf16.msra.mxu0 %v1030
        %1045 = vmatmul.bf16.gmra.mxu0 %v1035
        %v1046 = vpop.f32.mrf.mxu0
        %v1047 = vadd.f32 %v1020, %v1046
        %v1048 = vpop.f32.mrf.mxu0
        %1049 = vdwg.mxu0
        %v1050 = vmax.f32 %v1047, 0.0
        %v1051 = vld [vmem:[%s15] sm:$0xf]
        %v1052 = vld [vmem:[%s15 + $0x4] sm:$0xf]
        %v1053 = vld [vmem:[%s15 + $0x8] sm:$0xf]
        %v1054 = vld [vmem:[%s15 + $0xc] sm:$0xf]
        %v1055 = vld [vmem:[%s15 + $0x10] sm:$0xf]
        %v1056 = vld [vmem:[%s15 + $0x14] sm:$0xf]
        %v1057 = vld [vmem:[%s15 + $0x18] sm:$0xf]
        %v1058 = vld [vmem:[%s15 + $0x1c] sm:$0xf]
        %v1059 = vpack.c.bf16 %v1050, %v1050
        %v1060 = vld [vmem:[%s16] sm:$0x1]
        %v1062 = vperm.slane %v1060, 0
        %v1072 = vunpack.c.l.b16 %v1051
        %v1073 = vunpack.c.l.b16 %v1052
        %v1074 = vunpack.c.l.b16 %v1053
        %v1075 = vunpack.c.l.b16 %v1054
        %v1076 = vunpack.c.l.b16 %v1055
        %v1077 = vunpack.c.l.b16 %v1056
        %v1078 = vunpack.c.l.b16 %v1057
        %v1079 = vunpack.c.l.b16 %v1058
        %v1080 = vpack.c.b16 %v1073, %v1072
        %v1081 = vpack.c.b16 %v1075, %v1074
        %v1082 = vpack.c.b16 %v1077, %v1076
        %v1083 = vpack.c.b16 %v1079, %v1078
        %vm1088 = vcmask 523264
        %v1090 = vsel %vm1088, %v1059, 0
        %1092 = vmatpush.bf16.msra.mxu0 0
        %1093 = vmatpush.bf16.msra.mxu0 0
        %1094 = vmatpush.bf16.msra.mxu0 0
        %1095 = vmatpush.bf16.msra.mxu0 0
        %1096 = vmatpush.bf16.msra.mxu0 %v1083
        %1097 = vmatpush.bf16.msra.mxu0 %v1082
        %1098 = vmatpush.bf16.msra.mxu0 %v1081
        %1099 = vmatpush.bf16.msra.mxu0 %v1080
        %1100 = vmatmul.bf16.gmra.mxu0 %v1090
        %v1101 = vpop.f32.mrf.mxu0
        %v1102 = vadd.f32 %v1062, %v1101
        %v1103 = vpop.f32.mrf.mxu0
        %1104 = vdwg.mxu0
        %v1105 = vadd.f32 %v1012, %v1102
        %v1106 = vld [vmem:[%s17] sm:$0x1]
        %v1107 = vld [vmem:[%s18] sm:$0x1]
        %v1108 = vsel %vm789, %v1105, 0.0
        %1109 = vadd.xlane.f32.xlu0 %v1108
        %v1110 = vpop.xlane.xlu0 %1109
        %v1111 = vmul.f32 %v1110, %v985
        %v1112 = vsub.f32 %v1105, %v1111
        %v1113 = vmul.f32 %v1112, %v1112
        %v1114 = vsel %vm789, %v1113, 0.0
        %1115 = vadd.xlane.f32.xlu0 %v1114
        %v1116 = vpop.xlane.xlu0 %1115
        %v1117 = vmul.f32 %v1116, %v985
        %v1118 = vadd.f32 %v1117, 1e-05
        %v1119 = vrsqrt.pop %v1118
        %v1120 = vmul.f32 %v1119, %v1118
        %v1121 = vmul.f32 %v1120, %v1119
        %v1122 = vmul.f32 0.5, %v1121
        %v1123 = vsub.f32 1.5, %v1122
        %v1124 = vmul.f32 %v1119, %v1123
        %vm1125 = vweird.f32 %v1118
        %vm1126 = vweird.f32 %v1119
        %vm1127 = vmor %vm1125, %vm1126
        %v1128 = vsel %vm1127, %v1119, %v1124
        %v1129 = vmul.f32 %v1112, %v1128
        %v1131 = vperm.slane %v1106, 0
        %v1133 = vmul.f32 %v1129, %v1131
        %v1135 = vperm.slane %v1107, 0
        %v1137 = vadd.f32 %v1133, %v1135
        %1138 = vst.msk [vmem:[%s763] sm:$0xff] %vm789, %v1137
        %p1139 = scmp.lt.s32.totalorder %s39, 1
        %s1140 = scalar_select %p1139, %s39, 1
        %s1141 = smul.addr %s1140, 8
        %s1142 = scalar_lea.vmem %s19, %s1141
        %s1143 = sand.u32 %s487, 1
        %s1144 = scalar_lea.sflag [#allocation4], %s1143
        %s1145 = sand.u32 %s487, 1
        %s1146 = smul.addr %s1145, 8
        %s1147 = scalar_lea.vmem [#allocation13], %s1146
        // Predicated region
        $region121: #{module_transformer_call.1} parent=95 // pred_check
          %p1148 = pneg %p471
        $region122: #{module_transformer_call.1} parent=95 // pred_check_branch
          %1150 = sbr.rel (%p1148) target = $region124
        $region123: #{module_transformer_call.1} parent=95 // pred_region
          _
        $region124: #{module_transformer_call.1} parent=95 // pred_fallthru
          _
        // Predicated region
        $region125: #{module_transformer_call.1} parent=95 // pred_check
          %p1151 = pneg %p497
        $region126: #{module_transformer_call.1} parent=95 // pred_check_branch
          %1153 = sbr.rel (%p1151) target = $region128
        $region127: #{module_transformer_call.1} parent=95 // pred_region
          %1155 = vsyncadd %s1144, 0
          %s1156 = smul.addr %s39, 8
          %s1157 = scalar_lea.hbm %s20, %s1156
          %s1159 = sshll.u32 %s1147, 4
          %s1160 = int_to_ptr.vmem [resolvable:$true] %s1159
          %s1161 = sshll.u32 %s1157, 4
          %s1162 = int_to_ptr.hbm [resolvable:$true] %s1161
          %1164 = dma.vmem_to_hbm [thread:$0]  %s1160, 128, %s1162, %s1144
        $region128: #{module_transformer_call.1} parent=95 // pred_fallthru
          _
      $region96: #{module_transformer_call.1} parent=5 // pred_fallthru
        _
      %p1165 = scmp.le.s32.totalorder 2, %s34
      // Predicated region
      $region129: #{module_transformer_call.1} parent=5 // pred_check
        %p1166 = pneg %p1165
      $region130: #{module_transformer_call.1} parent=5 // pred_check_branch
        %1168 = sbr.rel (%p1166) target = $region132
      $region131: #{module_transformer_call.1} parent=5 // pred_region
        %s1169 = ssub.s32 %s34, 2
        // Predicated region
        $region133: #{module_transformer_call.1} parent=131 // pred_check
          %p1170 = pneg %p477
        $region134: #{module_transformer_call.1} parent=131 // pred_check_branch
          %1172 = sbr.rel (%p1170) target = $region136
        $region135: #{module_transformer_call.1} parent=131 // pred_region
          %p1173 = scmp.lt.s32.totalorder %s40, 1
          %s1174 = scalar_select %p1173, %s40, 1
          %s1175 = smul.addr %s1174, 8
          %s1176 = scalar_lea.vmem %s19, %s1175
        $region136: #{module_transformer_call.1} parent=131 // pred_fallthru
          _
        // Predicated region
        $region137: #{module_transformer_call.1} parent=131 // pred_check
          %p1177 = pneg %p503
        $region138: #{module_transformer_call.1} parent=131 // pred_check_branch
          %1179 = sbr.rel (%p1177) target = $region140
        $region139: #{module_transformer_call.1} parent=131 // pred_region
          %s1180 = sand.u32 %s488, 1
          %s1181 = scalar_lea.sflag [#allocation4], %s1180
          %s1182 = sand.u32 %s488, 1
          %s1183 = smul.addr %s1182, 8
          %s1184 = scalar_lea.vmem [#allocation13], %s1183
          %1186 = dma.done %s1181, 128
        $region140: #{module_transformer_call.1} parent=131 // pred_fallthru
          _
      $region132: #{module_transformer_call.1} parent=5 // pred_fallthru
        _
    $region6: #{module_transformer_call.1} parent=1 // loop_footer
      %s38 = sadd.s32 1, %s34
    $region7: #{module_transformer_call.1} parent=1 // loop_footer_branch
      %33 = sbr.rel target = $region3
    $region8: #{module_transformer_call.1} parent=1 // loop_exit
      _
    %1187 = vsyncpa [#allocation3], 1
    %s1188 = scalar_lea.sflag [#allocation3], 1
    %1189 = vsyncpa %s1188, 1
    %1190 = vsyncpa [#allocation6], 1
    %1191 = vsyncpa [#allocation9], 1
    %1192 = vsyncpa [#allocation12], 1
    %1193 = vsyncpa [#allocation4], 1
    %s1194 = scalar_lea.sflag [#allocation4], 1
    %1195 = vsyncpa %s1194, 1

</llo_original>
